<compile_context>
chip_gen: v7x
topology: tpu7x:2x2x1
jax: 0.10.0
libtpu: 0.0.40
codegen_flags: <defaults>
</compile_context>

<pallas_src>
import numpy as np

import jax
import jax.numpy as jnp
from jax.experimental import pallas as pl
from jax.experimental.pallas import tpu as pltpu

_VMEM_LIMIT = 32 * 1024 * 1024  # fits under v7x's 64 MiB physical VMEM


# ----------------------------------------------------------------------------
# Pallas kernels
# ----------------------------------------------------------------------------
def _sigmoid(y):
    # exp goes to the EUP; approx reciprocal also uses the EUP slot (no VPU divide).
    return pl.reciprocal(1.0 + jnp.exp(-y), approx=True)


def _conv_pool_kernel(cols_ref, w_ref, b_ref, pool_ref, o_ref):
    """One image per grid step: sigmoid(W @ cols + b), then 2x2 avg-pool.

    cols_ref: (1, K, Ho*Wo)   bf16   im2col columns of this image
    w_ref:    (Cout, K)       bf16   resident weights
    b_ref:    (Cout, 1)       f32    resident bias
    pool_ref: (Ho*Wo, Hp*Wp)  f32    resident 2x2 average-pool matrix
    o_ref:    (1, Cout, Hp*Wp) f32   pooled output of this image
    """
    y = jnp.dot(w_ref[...], cols_ref[0], preferred_element_type=jnp.float32)
    y = _sigmoid(y + b_ref[...])                      # (Cout, Ho*Wo), lane-dense
    o_ref[0] = jnp.dot(y, pool_ref[...], preferred_element_type=jnp.float32)


def _mlp_kernel(x_ref, w1_ref, b1_ref, w2_ref, b2_ref, w3_ref, b3_ref, o_ref):
    """Fused fc1 -> sigmoid -> fc2 -> sigmoid -> fc3 on one M-tile of rows."""
    h = jnp.dot(x_ref[...], w1_ref[...], preferred_element_type=jnp.float32)
    h = _sigmoid(h + b1_ref[...])
    h = jnp.dot(h.astype(jnp.bfloat16), w2_ref[...], preferred_element_type=jnp.float32)
    h = _sigmoid(h + b2_ref[...])
    h = jnp.dot(h.astype(jnp.bfloat16), w3_ref[...], preferred_element_type=jnp.float32)
    o_ref[...] = (h + b3_ref[...]).astype(o_ref.dtype)


# ----------------------------------------------------------------------------
# Plain-JAX glue
# ----------------------------------------------------------------------------
def _im2col_nchw(x, kh, kw, pad):
    """(B, C, H, W) -> (B, C*kh*kw, Ho*Wo); row order (c, i, j) matches
    PyTorch weight.reshape(Cout, C*kh*kw)."""
    B, C, H, W = x.shape
    if pad:
        x = jnp.pad(x, ((0, 0), (0, 0), (pad, pad), (pad, pad)))
    Ho = H + 2 * pad - kh + 1
    Wo = W + 2 * pad - kw + 1
    slabs = [x[:, :, i:i + Ho, j:j + Wo] for i in range(kh) for j in range(kw)]
    p = jnp.stack(slabs, axis=2)                       # (B, C, kh*kw, Ho, Wo)
    return p.reshape(B, C * kh * kw, Ho * Wo), Ho, Wo


def _pool_matrix(H, W):
    """Constant (H*W, (H//2)*(W//2)) matrix implementing 2x2/stride-2 avg pool."""
    Ho, Wo = H // 2, W // 2
    P = np.zeros((H * W, Ho * Wo), dtype=np.float32)
    for h in range(H):
        for w in range(W):
            P[h * W + w, (h // 2) * Wo + (w // 2)] = 0.25
    return jnp.asarray(P)


# ----------------------------------------------------------------------------
# Pallas wrappers
# ----------------------------------------------------------------------------
def conv_sigmoid_pool(x_nchw, weight, bias, *, padding):
    """nn.Conv2d(stride=1) + Sigmoid + AvgPool2d(2,2), fused in one Pallas call."""
    B = x_nchw.shape[0]
    Cout, Cin, kh, kw = weight.shape
    cols, Ho, Wo = _im2col_nchw(x_nchw.astype(jnp.bfloat16), kh, kw, padding)
    K, HW = Cin * kh * kw, Ho * Wo
    Hp, Wp = Ho // 2, Wo // 2
    HWp = Hp * Wp

    w2 = weight.reshape(Cout, K).astype(jnp.bfloat16)
    b2 = bias.reshape(Cout, 1).astype(jnp.float32)
    pool = _pool_matrix(Ho, Wo)

    out = pl.pallas_call(
        _conv_pool_kernel,
        out_shape=jax.ShapeDtypeStruct((B, Cout, HWp), jnp.float32),
        grid=(B,),
        in_specs=[
            pl.BlockSpec((1, K, HW), lambda b: (b, 0, 0)),   # per-image columns
            pl.BlockSpec((Cout, K), lambda b: (0, 0)),       # resident weights
            pl.BlockSpec((Cout, 1), lambda b: (0, 0)),       # resident bias
            pl.BlockSpec((HW, HWp), lambda b: (0, 0)),       # resident pool matrix
        ],
        out_specs=pl.BlockSpec((1, Cout, HWp), lambda b: (b, 0, 0)),
        compiler_params=pltpu.CompilerParams(
            dimension_semantics=("parallel",),
            vmem_limit_bytes=_VMEM_LIMIT,
        ),
    )(cols, w2, b2, pool)
    return out.reshape(B, Cout, Hp, Wp)                      # NCHW for next stage


def mlp_head(x, w1, b1, w2, b2, w3, b3, *, tm_max=512):
    """Fused Linear(400,120)+Sig -> Linear(120,84)+Sig -> Linear(84,10)."""
    B, K = x.shape
    TM = B if B <= tm_max else tm_max
    pad = (-B) % TM
    if pad:
        x = jnp.pad(x, ((0, pad), (0, 0)))
    Bp = B + pad

    H1, H2, H3 = w1.shape[1], w2.shape[1], w3.shape[1]
    args = (
        x.astype(jnp.bfloat16),
        w1.astype(jnp.bfloat16), b1.reshape(1, H1).astype(jnp.float32),
        w2.astype(jnp.bfloat16), b2.reshape(1, H2).astype(jnp.float32),
        w3.astype(jnp.bfloat16), b3.reshape(1, H3).astype(jnp.float32),
    )
    out = pl.pallas_call(
        _mlp_kernel,
        out_shape=jax.ShapeDtypeStruct((Bp, H3), jnp.float32),
        grid=(Bp // TM,),
        in_specs=[
            pl.BlockSpec((TM, K), lambda i: (i, 0)),   # M-tiled activations
            pl.BlockSpec((K, H1), lambda i: (0, 0)),   # resident weights/biases
            pl.BlockSpec((1, H1), lambda i: (0, 0)),
            pl.BlockSpec((H1, H2), lambda i: (0, 0)),
            pl.BlockSpec((1, H2), lambda i: (0, 0)),
            pl.BlockSpec((H2, H3), lambda i: (0, 0)),
            pl.BlockSpec((1, H3), lambda i: (0, 0)),
        ],
        out_specs=pl.BlockSpec((TM, H3), lambda i: (i, 0)),
        compiler_params=pltpu.CompilerParams(
            dimension_semantics=("parallel",),
            vmem_limit_bytes=_VMEM_LIMIT,
        ),
    )(*args)
    return out[:B]


# ----------------------------------------------------------------------------
# LeNet parameters + forward
# ----------------------------------------------------------------------------
def init_lenet_params(key):
    def uniform(key, shape, fan_in):
        bound = 1.0 / jnp.sqrt(jnp.float32(fan_in))
        return jax.random.uniform(key, shape, jnp.float32, -bound, bound)

    ks = jax.random.split(key, 10)
    p = {}
    p["conv1_w"] = uniform(ks[0], (6, 1, 5, 5), 1 * 5 * 5)
    p["conv1_b"] = uniform(ks[1], (6,), 1 * 5 * 5)
    p["conv2_w"] = uniform(ks[2], (16, 6, 5, 5), 6 * 5 * 5)
    p["conv2_b"] = uniform(ks[3], (16,), 6 * 5 * 5)
    p["fc1_w"] = uniform(ks[4], (16 * 5 * 5, 120), 16 * 5 * 5)
    p["fc1_b"] = uniform(ks[5], (120,), 16 * 5 * 5)
    p["fc2_w"] = uniform(ks[6], (120, 84), 120)
    p["fc2_b"] = uniform(ks[7], (84,), 120)
    p["fc3_w"] = uniform(ks[8], (84, 10), 84)
    p["fc3_b"] = uniform(ks[9], (10,), 84)
    return p


@jax.jit
def lenet_forward(params, x):
    # x: (B, 1, 28, 28) float32 (NCHW, like the PyTorch module)
    y = conv_sigmoid_pool(x, params["conv1_w"], params["conv1_b"], padding=2)  # (B,6,14,14)
    y = conv_sigmoid_pool(y, params["conv2_w"], params["conv2_b"], padding=0)  # (B,16,5,5)
    y = y.reshape(y.shape[0], -1)                                              # (B,400) == torch Flatten
    y = mlp_head(y, params["fc1_w"], params["fc1_b"],
                 params["fc2_w"], params["fc2_b"],
                 params["fc3_w"], params["fc3_b"])                             # (B,10)
    return y


if __name__ == "__main__":
    key = jax.random.PRNGKey(0)
    pkey, xkey = jax.random.split(key)
    params = init_lenet_params(pkey)
    x = jax.random.normal(xkey, (2, 1, 28, 28), dtype=jnp.float32)
    out = lenet_forward(params, x)
    jax.block_until_ready(out)
    assert out.shape == (2, 10), out.shape
    assert bool(jnp.all(jnp.isfinite(out)))
    print("KERNEL_OK")
</pallas_src>

<mosaic_0001>
module attributes {stable_mosaic.version = 11 : i64} {
  func.func @_conv_pool_kernel(%arg0: i32, %arg1: memref<1x25x784xbf16, #tpu.memory_space<vmem>>, %arg2: memref<6x25xbf16, #tpu.memory_space<vmem>>, %arg3: memref<6x1xf32, #tpu.memory_space<vmem>>, %arg4: memref<784x196xf32, #tpu.memory_space<vmem>>, %arg5: memref<1x6x196xf32, #tpu.memory_space<vmem>>) attributes {dimension_semantics = [#tpu.dimension_semantics<parallel>], iteration_bounds = array<i64: 2>, scalar_prefetch = 0 : i64, scratch_operands = 0 : i64, tpu.core_type = #tpu.core_type<tc>, window_params = [{transform_indices = @transform_0, window_bounds = array<i64: 1, 25, 784>}, {pipeline_mode = #tpu.pipeline_mode<synchronous>, transform_indices = @transform_1, window_bounds = array<i64: 6, 25>}, {pipeline_mode = #tpu.pipeline_mode<synchronous>, transform_indices = @transform_2, window_bounds = array<i64: 6, 1>}, {pipeline_mode = #tpu.pipeline_mode<synchronous>, transform_indices = @transform_3, window_bounds = array<i64: 784, 196>}, {transform_indices = @transform_4, window_bounds = array<i64: 1, 6, 196>}]} {
    %c0 = arith.constant 0 : index
    %c0_0 = arith.constant 0 : index
    %0 = vector.load %arg2[%c0, %c0_0] : memref<6x25xbf16, #tpu.memory_space<vmem>>, vector<6x25xbf16>
    %c0_1 = arith.constant 0 : index
    %c0_2 = arith.constant 0 : index
    %c0_3 = arith.constant 0 : index
    %1 = vector.load %arg1[%c0_1, %c0_2, %c0_3] : memref<1x25x784xbf16, #tpu.memory_space<vmem>>, vector<1x25x784xbf16>
    %2 = vector.shape_cast %1 : vector<1x25x784xbf16> to vector<25x784xbf16>
    %cst = arith.constant dense<0.000000e+00> : vector<6x784xf32>
    %3 = tpu.matmul %0, %2, %cst {dimension_numbers = #tpu.dot_dimension_numbers<[1], [0], [0], [1], [0, 0, 1, 1], [], []>} : vector<6x25xbf16>, vector<25x784xbf16>, vector<6x784xf32> -> vector<6x784xf32>
    %c0_4 = arith.constant 0 : index
    %c0_5 = arith.constant 0 : index
    %4 = vector.load %arg3[%c0_4, %c0_5] : memref<6x1xf32, #tpu.memory_space<vmem>>, vector<6x1xf32>
    %5 = vector.broadcast %4 : vector<6x1xf32> to vector<6x784xf32>
    %6 = arith.addf %3, %5 : vector<6x784xf32>
    %cst_6 = arith.constant 0.000000e+00 : f32
    %7 = vector.broadcast %cst_6 : f32 to vector<6x784xf32>
    %8 = arith.subf %7, %6 : vector<6x784xf32>
    %9 = math.exp %8 : vector<6x784xf32>
    %cst_7 = arith.constant 1.000000e+00 : f32
    %10 = vector.broadcast %cst_7 : f32 to vector<6x784xf32>
    %11 = arith.addf %10, %9 : vector<6x784xf32>
    %12 = tpu.reciprocal %11 {approx = true} : vector<6x784xf32> -> vector<6x784xf32>
    %c0_8 = arith.constant 0 : index
    %c0_9 = arith.constant 0 : index
    %13 = vector.load %arg4[%c0_8, %c0_9] : memref<784x196xf32, #tpu.memory_space<vmem>>, vector<784x196xf32>
    %cst_10 = arith.constant dense<0.000000e+00> : vector<6x196xf32>
    %14 = tpu.matmul %12, %13, %cst_10 {dimension_numbers = #tpu.dot_dimension_numbers<[1], [0], [0], [1], [0, 0, 1, 1], [], []>} : vector<6x784xf32>, vector<784x196xf32>, vector<6x196xf32> -> vector<6x196xf32>
    %c0_11 = arith.constant 0 : index
    %c0_12 = arith.constant 0 : index
    %c0_13 = arith.constant 0 : index
    %15 = vector.load %arg5[%c0_11, %c0_12, %c0_13] : memref<1x6x196xf32, #tpu.memory_space<vmem>>, vector<1x6x196xf32>
    %16 = vector.shape_cast %15 : vector<1x6x196xf32> to vector<6x196xf32>
    %17 = vector.shape_cast %14 : vector<6x196xf32> to vector<1x6x196xf32>
    tpu.vector_store %arg5[%c0_11, %c0_12, %c0_13], %17 {strides = array<i32>} : memref<1x6x196xf32, #tpu.memory_space<vmem>>, vector<1x6x196xf32>,
    return
  }
  func.func @transform_0(%arg0: i32) -> (i32, i32, i32) {
    %c0_i32 = arith.constant 0 : i32
    %c0_i32_0 = arith.constant 0 : i32
    %c0_i32_1 = arith.constant 0 : i32
    return %arg0, %c0_i32, %c0_i32_0 : i32, i32, i32
  }
  func.func @transform_1(%arg0: i32) -> (i32, i32) {
    %c0_i32 = arith.constant 0 : i32
    %c0_i32_0 = arith.constant 0 : i32
    %c0_i32_1 = arith.constant 0 : i32
    return %c0_i32, %c0_i32_0 : i32, i32
  }
  func.func @transform_2(%arg0: i32) -> (i32, i32) {
    %c0_i32 = arith.constant 0 : i32
    %c0_i32_0 = arith.constant 0 : i32
    %c0_i32_1 = arith.constant 0 : i32
    return %c0_i32, %c0_i32_0 : i32, i32
  }
  func.func @transform_3(%arg0: i32) -> (i32, i32) {
    %c0_i32 = arith.constant 0 : i32
    %c0_i32_0 = arith.constant 0 : i32
    %c0_i32_1 = arith.constant 0 : i32
    return %c0_i32, %c0_i32_0 : i32, i32
  }
  func.func @transform_4(%arg0: i32) -> (i32, i32, i32) {
    %c0_i32 = arith.constant 0 : i32
    %c0_i32_0 = arith.constant 0 : i32
    %c0_i32_1 = arith.constant 0 : i32
    return %arg0, %c0_i32, %c0_i32_0 : i32, i32, i32
  }
}

module attributes {stable_mosaic.version = 11 : i64} {
  func.func @_conv_pool_kernel(%arg0: i32, %arg1: memref<1x150x100xbf16, #tpu.memory_space<vmem>>, %arg2: memref<16x150xbf16, #tpu.memory_space<vmem>>, %arg3: memref<16x1xf32, #tpu.memory_space<vmem>>, %arg4: memref<100x25xf32, #tpu.memory_space<vmem>>, %arg5: memref<1x16x25xf32, #tpu.memory_space<vmem>>) attributes {dimension_semantics = [#tpu.dimension_semantics<parallel>], iteration_bounds = array<i64: 2>, scalar_prefetch = 0 : i64, scratch_operands = 0 : i64, tpu.core_type = #tpu.core_type<tc>, window_params = [{transform_indices = @transform_0, window_bounds = array<i64: 1, 150, 100>}, {pipeline_mode = #tpu.pipeline_mode<synchronous>, transform_indices = @transform_1, window_bounds = array<i64: 16, 150>}, {pipeline_mode = #tpu.pipeline_mode<synchronous>, transform_indices = @transform_2, window_bounds = array<i64: 16, 1>}, {pipeline_mode = #tpu.pipeline_mode<synchronous>, transform_indices = @transform_3, window_bounds = array<i64: 100, 25>}, {transform_indices = @transform_4, window_bounds = array<i64: 1, 16, 25>}]} {
    %c0 = arith.constant 0 : index
    %c0_0 = arith.constant 0 : index
    %0 = vector.load %arg2[%c0, %c0_0] : memref<16x150xbf16, #tpu.memory_space<vmem>>, vector<16x150xbf16>
    %c0_1 = arith.constant 0 : index
    %c0_2 = arith.constant 0 : index
    %c0_3 = arith.constant 0 : index
    %1 = vector.load %arg1[%c0_1, %c0_2, %c0_3] : memref<1x150x100xbf16, #tpu.memory_space<vmem>>, vector<1x150x100xbf16>
    %2 = vector.shape_cast %1 : vector<1x150x100xbf16> to vector<150x100xbf16>
    %cst = arith.constant dense<0.000000e+00> : vector<16x100xf32>
    %3 = tpu.matmul %0, %2, %cst {dimension_numbers = #tpu.dot_dimension_numbers<[1], [0], [0], [1], [0, 0, 1, 1], [], []>} : vector<16x150xbf16>, vector<150x100xbf16>, vector<16x100xf32> -> vector<16x100xf32>
    %c0_4 = arith.constant 0 : index
    %c0_5 = arith.constant 0 : index
    %4 = vector.load %arg3[%c0_4, %c0_5] : memref<16x1xf32, #tpu.memory_space<vmem>>, vector<16x1xf32>
    %5 = vector.broadcast %4 : vector<16x1xf32> to vector<16x100xf32>
    %6 = arith.addf %3, %5 : vector<16x100xf32>
    %cst_6 = arith.constant 0.000000e+00 : f32
    %7 = vector.broadcast %cst_6 : f32 to vector<16x100xf32>
    %8 = arith.subf %7, %6 : vector<16x100xf32>
    %9 = math.exp %8 : vector<16x100xf32>
    %cst_7 = arith.constant 1.000000e+00 : f32
    %10 = vector.broadcast %cst_7 : f32 to vector<16x100xf32>
    %11 = arith.addf %10, %9 : vector<16x100xf32>
    %12 = tpu.reciprocal %11 {approx = true} : vector<16x100xf32> -> vector<16x100xf32>
    %c0_8 = arith.constant 0 : index
    %c0_9 = arith.constant 0 : index
    %13 = vector.load %arg4[%c0_8, %c0_9] : memref<100x25xf32, #tpu.memory_space<vmem>>, vector<100x25xf32>
    %cst_10 = arith.constant dense<0.000000e+00> : vector<16x25xf32>
    %14 = tpu.matmul %12, %13, %cst_10 {dimension_numbers = #tpu.dot_dimension_numbers<[1], [0], [0], [1], [0, 0, 1, 1], [], []>} : vector<16x100xf32>, vector<100x25xf32>, vector<16x25xf32> -> vector<16x25xf32>
    %c0_11 = arith.constant 0 : index
    %c0_12 = arith.constant 0 : index
    %c0_13 = arith.constant 0 : index
    %15 = vector.load %arg5[%c0_11, %c0_12, %c0_13] : memref<1x16x25xf32, #tpu.memory_space<vmem>>, vector<1x16x25xf32>
    %16 = vector.shape_cast %15 : vector<1x16x25xf32> to vector<16x25xf32>
    %17 = vector.shape_cast %14 : vector<16x25xf32> to vector<1x16x25xf32>
    tpu.vector_store %arg5[%c0_11, %c0_12, %c0_13], %17 {strides = array<i32>} : memref<1x16x25xf32, #tpu.memory_space<vmem>>, vector<1x16x25xf32>,
    return
  }
  func.func @transform_0(%arg0: i32) -> (i32, i32, i32) {
    %c0_i32 = arith.constant 0 : i32
    %c0_i32_0 = arith.constant 0 : i32
    %c0_i32_1 = arith.constant 0 : i32
    return %arg0, %c0_i32, %c0_i32_0 : i32, i32, i32
  }
  func.func @transform_1(%arg0: i32) -> (i32, i32) {
    %c0_i32 = arith.constant 0 : i32
    %c0_i32_0 = arith.constant 0 : i32
    %c0_i32_1 = arith.constant 0 : i32
    return %c0_i32, %c0_i32_0 : i32, i32
  }
  func.func @transform_2(%arg0: i32) -> (i32, i32) {
    %c0_i32 = arith.constant 0 : i32
    %c0_i32_0 = arith.constant 0 : i32
    %c0_i32_1 = arith.constant 0 : i32
    return %c0_i32, %c0_i32_0 : i32, i32
  }
  func.func @transform_3(%arg0: i32) -> (i32, i32) {
    %c0_i32 = arith.constant 0 : i32
    %c0_i32_0 = arith.constant 0 : i32
    %c0_i32_1 = arith.constant 0 : i32
    return %c0_i32, %c0_i32_0 : i32, i32
  }
  func.func @transform_4(%arg0: i32) -> (i32, i32, i32) {
    %c0_i32 = arith.constant 0 : i32
    %c0_i32_0 = arith.constant 0 : i32
    %c0_i32_1 = arith.constant 0 : i32
    return %arg0, %c0_i32, %c0_i32_0 : i32, i32, i32
  }
}

module attributes {stable_mosaic.version = 11 : i64} {
  func.func @_mlp_kernel(%arg0: i32, %arg1: memref<2x400xbf16, #tpu.memory_space<vmem>>, %arg2: memref<400x120xbf16, #tpu.memory_space<vmem>>, %arg3: memref<1x120xf32, #tpu.memory_space<vmem>>, %arg4: memref<120x84xbf16, #tpu.memory_space<vmem>>, %arg5: memref<1x84xf32, #tpu.memory_space<vmem>>, %arg6: memref<84x10xbf16, #tpu.memory_space<vmem>>, %arg7: memref<1x10xf32, #tpu.memory_space<vmem>>, %arg8: memref<2x10xf32, #tpu.memory_space<vmem>>) attributes {dimension_semantics = [#tpu.dimension_semantics<parallel>], iteration_bounds = array<i64: 1>, scalar_prefetch = 0 : i64, scratch_operands = 0 : i64, tpu.core_type = #tpu.core_type<tc>, window_params = [{transform_indices = @transform_0, window_bounds = array<i64: 2, 400>}, {pipeline_mode = #tpu.pipeline_mode<synchronous>, transform_indices = @transform_1, window_bounds = array<i64: 400, 120>}, {pipeline_mode = #tpu.pipeline_mode<synchronous>, transform_indices = @transform_2, window_bounds = array<i64: 1, 120>}, {pipeline_mode = #tpu.pipeline_mode<synchronous>, transform_indices = @transform_3, window_bounds = array<i64: 120, 84>}, {pipeline_mode = #tpu.pipeline_mode<synchronous>, transform_indices = @transform_4, window_bounds = array<i64: 1, 84>}, {pipeline_mode = #tpu.pipeline_mode<synchronous>, transform_indices = @transform_5, window_bounds = array<i64: 84, 10>}, {pipeline_mode = #tpu.pipeline_mode<synchronous>, transform_indices = @transform_6, window_bounds = array<i64: 1, 10>}, {transform_indices = @transform_7, window_bounds = array<i64: 2, 10>}]} {
    %c0 = arith.constant 0 : index
    %c0_0 = arith.constant 0 : index
    %0 = vector.load %arg1[%c0, %c0_0] : memref<2x400xbf16, #tpu.memory_space<vmem>>, vector<2x400xbf16>
    %c0_1 = arith.constant 0 : index
    %c0_2 = arith.constant 0 : index
    %1 = vector.load %arg2[%c0_1, %c0_2] : memref<400x120xbf16, #tpu.memory_space<vmem>>, vector<400x120xbf16>
    %cst = arith.constant dense<0.000000e+00> : vector<2x120xf32>
    %2 = tpu.matmul %0, %1, %cst {dimension_numbers = #tpu.dot_dimension_numbers<[1], [0], [0], [1], [0, 0, 1, 1], [], []>} : vector<2x400xbf16>, vector<400x120xbf16>, vector<2x120xf32> -> vector<2x120xf32>
    %c0_3 = arith.constant 0 : index
    %c0_4 = arith.constant 0 : index
    %3 = vector.load %arg3[%c0_3, %c0_4] : memref<1x120xf32, #tpu.memory_space<vmem>>, vector<1x120xf32>
    %4 = vector.broadcast %3 : vector<1x120xf32> to vector<2x120xf32>
    %5 = arith.addf %2, %4 : vector<2x120xf32>
    %cst_5 = arith.constant 0.000000e+00 : f32
    %6 = vector.broadcast %cst_5 : f32 to vector<2x120xf32>
    %7 = arith.subf %6, %5 : vector<2x120xf32>
    %8 = math.exp %7 : vector<2x120xf32>
    %cst_6 = arith.constant 1.000000e+00 : f32
    %9 = vector.broadcast %cst_6 : f32 to vector<2x120xf32>
    %10 = arith.addf %9, %8 : vector<2x120xf32>
    %11 = tpu.reciprocal %10 {approx = true} : vector<2x120xf32> -> vector<2x120xf32>
    %12 = arith.truncf %11 : vector<2x120xf32> to vector<2x120xbf16>
    %c0_7 = arith.constant 0 : index
    %c0_8 = arith.constant 0 : index
    %13 = vector.load %arg4[%c0_7, %c0_8] : memref<120x84xbf16, #tpu.memory_space<vmem>>, vector<120x84xbf16>
    %cst_9 = arith.constant dense<0.000000e+00> : vector<2x84xf32>
    %14 = tpu.matmul %12, %13, %cst_9 {dimension_numbers = #tpu.dot_dimension_numbers<[1], [0], [0], [1], [0, 0, 1, 1], [], []>} : vector<2x120xbf16>, vector<120x84xbf16>, vector<2x84xf32> -> vector<2x84xf32>
    %c0_10 = arith.constant 0 : index
    %c0_11 = arith.constant 0 : index
    %15 = vector.load %arg5[%c0_10, %c0_11] : memref<1x84xf32, #tpu.memory_space<vmem>>, vector<1x84xf32>
    %16 = vector.broadcast %15 : vector<1x84xf32> to vector<2x84xf32>
    %17 = arith.addf %14, %16 : vector<2x84xf32>
    %cst_12 = arith.constant 0.000000e+00 : f32
    %18 = vector.broadcast %cst_12 : f32 to vector<2x84xf32>
    %19 = arith.subf %18, %17 : vector<2x84xf32>
    %20 = math.exp %19 : vector<2x84xf32>
    %cst_13 = arith.constant 1.000000e+00 : f32
    %21 = vector.broadcast %cst_13 : f32 to vector<2x84xf32>
    %22 = arith.addf %21, %20 : vector<2x84xf32>
    %23 = tpu.reciprocal %22 {approx = true} : vector<2x84xf32> -> vector<2x84xf32>
    %24 = arith.truncf %23 : vector<2x84xf32> to vector<2x84xbf16>
    %c0_14 = arith.constant 0 : index
    %c0_15 = arith.constant 0 : index
    %25 = vector.load %arg6[%c0_14, %c0_15] : memref<84x10xbf16, #tpu.memory_space<vmem>>, vector<84x10xbf16>
    %cst_16 = arith.constant dense<0.000000e+00> : vector<2x10xf32>
    %26 = tpu.matmul %24, %25, %cst_16 {dimension_numbers = #tpu.dot_dimension_numbers<[1], [0], [0], [1], [0, 0, 1, 1], [], []>} : vector<2x84xbf16>, vector<84x10xbf16>, vector<2x10xf32> -> vector<2x10xf32>
    %c0_17 = arith.constant 0 : index
    %c0_18 = arith.constant 0 : index
    %27 = vector.load %arg7[%c0_17, %c0_18] : memref<1x10xf32, #tpu.memory_space<vmem>>, vector<1x10xf32>
    %28 = vector.broadcast %27 : vector<1x10xf32> to vector<2x10xf32>
    %29 = arith.addf %26, %28 : vector<2x10xf32>
    %c0_19 = arith.constant 0 : index
    %c0_20 = arith.constant 0 : index
    %30 = vector.load %arg8[%c0_19, %c0_20] : memref<2x10xf32, #tpu.memory_space<vmem>>, vector<2x10xf32>
    tpu.vector_store %arg8[%c0_19, %c0_20], %29 {strides = array<i32>} : memref<2x10xf32, #tpu.memory_space<vmem>>, vector<2x10xf32>,
    return
  }
  func.func @transform_0(%arg0: i32) -> (i32, i32) {
    %c0_i32 = arith.constant 0 : i32
    %c0_i32_0 = arith.constant 0 : i32
    return %arg0, %c0_i32 : i32, i32
  }
  func.func @transform_1(%arg0: i32) -> (i32, i32) {
    %c0_i32 = arith.constant 0 : i32
    %c0_i32_0 = arith.constant 0 : i32
    %c0_i32_1 = arith.constant 0 : i32
    return %c0_i32, %c0_i32_0 : i32, i32
  }
  func.func @transform_2(%arg0: i32) -> (i32, i32) {
    %c0_i32 = arith.constant 0 : i32
    %c0_i32_0 = arith.constant 0 : i32
    %c0_i32_1 = arith.constant 0 : i32
    return %c0_i32, %c0_i32_0 : i32, i32
  }
  func.func @transform_3(%arg0: i32) -> (i32, i32) {
    %c0_i32 = arith.constant 0 : i32
    %c0_i32_0 = arith.constant 0 : i32
    %c0_i32_1 = arith.constant 0 : i32
    return %c0_i32, %c0_i32_0 : i32, i32
  }
  func.func @transform_4(%arg0: i32) -> (i32, i32) {
    %c0_i32 = arith.constant 0 : i32
    %c0_i32_0 = arith.constant 0 : i32
    %c0_i32_1 = arith.constant 0 : i32
    return %c0_i32, %c0_i32_0 : i32, i32
  }
  func.func @transform_5(%arg0: i32) -> (i32, i32) {
    %c0_i32 = arith.constant 0 : i32
    %c0_i32_0 = arith.constant 0 : i32
    %c0_i32_1 = arith.constant 0 : i32
    return %c0_i32, %c0_i32_0 : i32, i32
  }
  func.func @transform_6(%arg0: i32) -> (i32, i32) {
    %c0_i32 = arith.constant 0 : i32
    %c0_i32_0 = arith.constant 0 : i32
    %c0_i32_1 = arith.constant 0 : i32
    return %c0_i32, %c0_i32_0 : i32, i32
  }
  func.func @transform_7(%arg0: i32) -> (i32, i32) {
    %c0_i32 = arith.constant 0 : i32
    %c0_i32_0 = arith.constant 0 : i32
    return %arg0, %c0_i32 : i32, i32
  }
}

</mosaic_0001>

<llo_original>
// kernel: lenet_forward.3
$region0: #{lenet_forward.3}
  #allocation0 [shape = 'u32[]', space=smem, size = 0x4, offset = 0x4, fixed_abs, tag = 'smem constant byte address 0x4 - core index']
  #allocation1 [shape = 'u32[144,128]{1,0:T(1,128)}', space=vmem, size = 0x12000, scoped, tag = 'internal scratch']
  %s0 = inlined_call_operand.vmem [shape: bf16[2,25,784], index: 0, kind: input, shape index: {}]
  %s1 = inlined_call_operand.vmem [shape: bf16[6,25], index: 1, kind: input, shape index: {}]
  %s2 = inlined_call_operand.vmem [shape: f32[6,1], index: 2, kind: input, shape index: {}]
  %s3 = inlined_call_operand.vmem [shape: f32[784,196], index: 3, kind: input, shape index: {}]
  %s4 = inlined_call_operand.vmem [shape: f32[2,6,196], index: 4, kind: output, shape index: {}]
  %s5 = sld [smem:[#allocation0]]
  $region49: #{lenet_forward.3} parent=0
    _
  %s7 = ssub.s32 1, %s5
  %s8 = scalar_select 0, %s7, %s5
  loop: start=0, step=1, limit=4
  $region2: #{lenet_forward.3} parent=0 // loop_pre_header
    _
  $region3: #{lenet_forward.3} parent=0 // loop_header
    %s10 = sphi 0, %s14
    %p11 = scmp.ge.s32.totalorder %s10, 4
    %s20 = sphi 0, %s22
    %s23 = sphi 0, %s20
    %s24 = sphi 0, %s23
    %s40 = sphi 0, %s24
    %s44 = sphi 0, %s44
    %s46 = sphi 0, %s44
    %s47 = sphi 0, %s46
    %s61 = sphi 0, %s47
    %s65 = sphi 0, %s65
    %s67 = sphi 0, %s65
    %s68 = sphi 0, %s67
    %s82 = sphi 0, %s68
    %s86 = sphi 0, %s86
    %s88 = sphi 0, %s86
    %s89 = sphi 0, %s88
    %s103 = sphi 0, %s89
    %s109 = sphi 0, %s111
    %s112 = sphi 0, %s109
    %s113 = sphi 0, %s112
    %s129 = sphi 0, %s113
  $region4: #{lenet_forward.3} parent=0 // loop_header_branch
    %13 = sbr.rel (%p11) target = $region8
  $region5: #{lenet_forward.3} parent=0 // loop_body
    %s15 = ssub.s32 %s10, 1
    %s16 = ssub.s32 %s10, 2
    %s17 = sadd.s32 %s10, 1
    %s18 = ssub.s32 %s10, %s17
    %p19 = scmp.eq.s32.totalorder %s18, 0
    %s21 = sadd.s32 %s20, 1
    %s22 = scalar_select %p19, %s20, %s21
    %p25 = pneg %p19
    %p26 = scmp.eq.s32.totalorder %s10, 1
    %p27 = por %p25, %p26
    %p28 = scmp.ne.s32.totalorder %s20, %s23
    %p29 = scmp.eq.s32.totalorder %s10, 0
    %p30 = por %p28, %p29
    %p31 = scmp.ne.s32.totalorder %s20, %s23
    %p32 = scmp.eq.s32.totalorder %s15, 1
    %p33 = por %p31, %p32
    %p34 = scmp.ne.s32.totalorder %s23, %s24
    %p35 = scmp.eq.s32.totalorder %s15, 0
    %p36 = por %p34, %p35
    %p37 = scmp.ne.s32.totalorder %s23, %s24
    %p38 = scmp.eq.s32.totalorder %s16, 1
    %p39 = por %p37, %p38
    %p41 = scmp.ne.s32.totalorder %s24, %s40
    %p42 = scmp.eq.s32.totalorder %s16, 0
    %p43 = por %p41, %p42
    %s45 = sadd.s32 %s44, 1
    %p48 = scmp.eq.s32.totalorder %s10, 1
    %p49 = scmp.ne.s32.totalorder %s44, %s46
    %p50 = scmp.eq.s32.totalorder %s10, 0
    %p51 = por %p49, %p50
    %p52 = scmp.ne.s32.totalorder %s44, %s46
    %p53 = scmp.eq.s32.totalorder %s15, 1
    %p54 = por %p52, %p53
    %p55 = scmp.ne.s32.totalorder %s46, %s47
    %p56 = scmp.eq.s32.totalorder %s15, 0
    %p57 = por %p55, %p56
    %p58 = scmp.ne.s32.totalorder %s46, %s47
    %p59 = scmp.eq.s32.totalorder %s16, 1
    %p60 = por %p58, %p59
    %p62 = scmp.ne.s32.totalorder %s47, %s61
    %p63 = scmp.eq.s32.totalorder %s16, 0
    %p64 = por %p62, %p63
    %s66 = sadd.s32 %s65, 1
    %p69 = scmp.eq.s32.totalorder %s10, 1
    %p70 = scmp.ne.s32.totalorder %s65, %s67
    %p71 = scmp.eq.s32.totalorder %s10, 0
    %p72 = por %p70, %p71
    %p73 = scmp.ne.s32.totalorder %s65, %s67
    %p74 = scmp.eq.s32.totalorder %s15, 1
    %p75 = por %p73, %p74
    %p76 = scmp.ne.s32.totalorder %s67, %s68
    %p77 = scmp.eq.s32.totalorder %s15, 0
    %p78 = por %p76, %p77
    %p79 = scmp.ne.s32.totalorder %s67, %s68
    %p80 = scmp.eq.s32.totalorder %s16, 1
    %p81 = por %p79, %p80
    %p83 = scmp.ne.s32.totalorder %s68, %s82
    %p84 = scmp.eq.s32.totalorder %s16, 0
    %p85 = por %p83, %p84
    %s87 = sadd.s32 %s86, 1
    %p90 = scmp.eq.s32.totalorder %s10, 1
    %p91 = scmp.ne.s32.totalorder %s86, %s88
    %p92 = scmp.eq.s32.totalorder %s10, 0
    %p93 = por %p91, %p92
    %p94 = scmp.ne.s32.totalorder %s86, %s88
    %p95 = scmp.eq.s32.totalorder %s15, 1
    %p96 = por %p94, %p95
    %p97 = scmp.ne.s32.totalorder %s88, %s89
    %p98 = scmp.eq.s32.totalorder %s15, 0
    %p99 = por %p97, %p98
    %p100 = scmp.ne.s32.totalorder %s88, %s89
    %p101 = scmp.eq.s32.totalorder %s16, 1
    %p102 = por %p100, %p101
    %p104 = scmp.ne.s32.totalorder %s89, %s103
    %p105 = scmp.eq.s32.totalorder %s16, 0
    %p106 = por %p104, %p105
    %s107 = ssub.s32 %s10, %s17
    %p108 = scmp.eq.s32.totalorder %s107, 0
    %s110 = sadd.s32 %s109, 1
    %s111 = scalar_select %p108, %s109, %s110
    %p114 = pneg %p108
    %p115 = scmp.eq.s32.totalorder %s10, 1
    %p116 = por %p114, %p115
    %p117 = scmp.ne.s32.totalorder %s109, %s112
    %p118 = scmp.eq.s32.totalorder %s10, 0
    %p119 = por %p117, %p118
    %p120 = scmp.ne.s32.totalorder %s109, %s112
    %p121 = scmp.eq.s32.totalorder %s15, 1
    %p122 = por %p120, %p121
    %p123 = scmp.ne.s32.totalorder %s112, %s113
    %p124 = scmp.eq.s32.totalorder %s15, 0
    %p125 = por %p123, %p124
    %p126 = scmp.ne.s32.totalorder %s112, %s113
    %p127 = scmp.eq.s32.totalorder %s16, 1
    %p128 = por %p126, %p127
    %p130 = scmp.ne.s32.totalorder %s113, %s129
    %p131 = scmp.eq.s32.totalorder %s16, 0
    %p132 = por %p130, %p131
    %p133 = scmp.le.s32.totalorder 1, %s10
    %p134 = scmp.lt.s32.totalorder %s10, 3
    %p135 = pnand %p133, %p134
    %p136 = pneg %p135
    // Predicated region
    $region9: #{lenet_forward.3} parent=5 // pred_check
      _
    $region10: #{lenet_forward.3} parent=5 // pred_check_branch
      %138 = sbr.rel (%p135) target = $region12
    $region11: #{lenet_forward.3} parent=5 // pred_region
      %s139 = ssub.s32 %s10, 1
      // Predicated region
      $region13: #{lenet_forward.3} parent=11 // pred_check
        %p140 = pneg %p57
      $region14: #{lenet_forward.3} parent=11 // pred_check_branch
        %142 = sbr.rel (%p140) target = $region16
      $region15: #{lenet_forward.3} parent=11 // pred_region
        _
      $region16: #{lenet_forward.3} parent=11 // pred_fallthru
        _
      // Predicated region
      $region17: #{lenet_forward.3} parent=11 // pred_check
        %p143 = pneg %p78
      $region18: #{lenet_forward.3} parent=11 // pred_check_branch
        %145 = sbr.rel (%p143) target = $region20
      $region19: #{lenet_forward.3} parent=11 // pred_region
        _
      $region20: #{lenet_forward.3} parent=11 // pred_fallthru
        _
      // Predicated region
      $region21: #{lenet_forward.3} parent=11 // pred_check
        %p146 = pneg %p99
      $region22: #{lenet_forward.3} parent=11 // pred_check_branch
        %148 = sbr.rel (%p146) target = $region24
      $region23: #{lenet_forward.3} parent=11 // pred_region
        _
      $region24: #{lenet_forward.3} parent=11 // pred_fallthru
        _
    $region12: #{lenet_forward.3} parent=5 // pred_fallthru
      _
    %p149 = scmp.lt.s32.totalorder %s10, 2
    // Predicated region
    $region25: #{lenet_forward.3} parent=5 // pred_check
      %p150 = pneg %p149
    $region26: #{lenet_forward.3} parent=5 // pred_check_branch
      %152 = sbr.rel (%p150) target = $region28
    $region27: #{lenet_forward.3} parent=5 // pred_region
      // Predicated region
      $region29: #{lenet_forward.3} parent=27 // pred_check
        %p153 = pneg %p30
      $region30: #{lenet_forward.3} parent=27 // pred_check_branch
        %155 = sbr.rel (%p153) target = $region32
      $region31: #{lenet_forward.3} parent=27 // pred_region
        %p156 = scmp.lt.s32.totalorder %s10, 1
        %s157 = scalar_select %p156, %s10, 1
        %s158 = smul.addr %s157, 28
        %s159 = smul.addr %s158, 4
        %s160 = scalar_lea.vmem %s0, %s159
      $region32: #{lenet_forward.3} parent=27 // pred_fallthru
        _
    $region28: #{lenet_forward.3} parent=5 // pred_fallthru
      _
    %p161 = scmp.le.s32.totalorder 1, %s10
    %p162 = scmp.lt.s32.totalorder %s10, 3
    %p163 = pnand %p161, %p162
    %p164 = pneg %p163
    // Predicated region
    $region33: #{lenet_forward.3} parent=5 // pred_check
      _
    $region34: #{lenet_forward.3} parent=5 // pred_check_branch
      %166 = sbr.rel (%p163) target = $region36
    $region35: #{lenet_forward.3} parent=5 // pred_region
      %s167 = ssub.s32 %s10, 1
      %p168 = scmp.lt.s32.totalorder %s15, 1
      %s169 = scalar_select %p168, %s15, 1
      %s170 = smul.addr %s169, 28
      %s171 = smul.addr %s170, 4
      %s172 = scalar_lea.vmem %s0, %s171
      %p173 = pneg %p36
      %p174 = pneg %p33
      %p175 = pneg %p57
      %p176 = pneg %p54
      %p177 = pneg %p78
      %p178 = pneg %p75
      %p179 = pneg %p99
      %p180 = pneg %p96
      %p181 = pneg %p125
      %p182 = pneg %p122
      %p183 = scmp.lt.s32.totalorder %s15, 1
      %s184 = scalar_select %p183, %s15, 1
      %s185 = smul.addr %s184, 2
      %s186 = smul.addr %s185, 8
      %s187 = scalar_lea.vmem %s4, %s186
      %p188 = scmp.lt.s32.totalorder %s15, 1
      %s189 = scalar_select %p188, %s15, 1
      %s190 = smul.addr %s189, 28
      %s191 = smul.addr %s190, 4
      %s192 = scalar_lea.vmem %s0, %s191
      %p193 = scmp.lt.s32.totalorder %s15, 1
      %s194 = scalar_select %p193, %s15, 1
      %s195 = smul.addr %s194, 2
      %s196 = smul.addr %s195, 8
      %s197 = scalar_lea.vmem %s4, %s196
      %v199 = vld [vmem:[%s1] sm:$0x7]
      %v200 = vld [vmem:[%s192] sm:$0xff]
      %v201 = vld [vmem:[%s192 + $0x8] sm:$0xff]
      %v202 = vld [vmem:[%s192 + $0x10] sm:$0xff]
      %v203 = vld [vmem:[%s192 + $0x18] sm:$0xf]
      %v204 = vld [vmem:[%s192 + $0x1c] sm:$0xff]
      %v205 = vld [vmem:[%s192 + $0x24] sm:$0xff]
      %v206 = vld [vmem:[%s192 + $0x2c] sm:$0xff]
      %v207 = vld [vmem:[%s192 + $0x34] sm:$0xf]
      %v208 = vld [vmem:[%s192 + $0x38] sm:$0xff]
      %v209 = vld [vmem:[%s192 + $0x40] sm:$0xff]
      %v210 = vld [vmem:[%s192 + $0x48] sm:$0xff]
      %v211 = vld [vmem:[%s192 + $0x50] sm:$0xf]
      %v212 = vld [vmem:[%s192 + $0x54] sm:$0x11]
      %v213 = vld [vmem:[%s192 + $0x5c] sm:$0x11]
      %v214 = vld [vmem:[%s192 + $0x64] sm:$0x11]
      %v215 = vld [vmem:[%s192 + $0x6c] sm:$0x1]
      %v216 = vld [vmem:[%s2] sm:$0x3f]
      %218 = vset.pattern.permute.xlu0 0
      %219 = vperm.xlu0 %218, %v216
      %v220 = vpop.permute.xlu0 %219
      %v238 = vunpack.c.l.b16 %v200
      %v239 = vunpack.c.h.b16 %v200
      %v240 = vunpack.c.l.b16 %v201
      %v241 = vunpack.c.h.b16 %v201
      %v242 = vunpack.c.l.b16 %v202
      %v243 = vunpack.c.h.b16 %v202
      %v244 = vunpack.c.l.b16 %v203
      %v245 = vunpack.c.l.b16 %v204
      %v246 = vunpack.c.h.b16 %v204
      %v247 = vunpack.c.l.b16 %v205
      %v248 = vunpack.c.h.b16 %v205
      %v249 = vunpack.c.l.b16 %v206
      %v250 = vunpack.c.h.b16 %v206
      %v251 = vunpack.c.l.b16 %v207
      %v252 = vunpack.c.l.b16 %v208
      %v253 = vunpack.c.h.b16 %v208
      %v254 = vunpack.c.l.b16 %v209
      %v255 = vunpack.c.h.b16 %v209
      %v256 = vunpack.c.l.b16 %v210
      %v257 = vunpack.c.h.b16 %v210
      %v258 = vunpack.c.l.b16 %v211
      %v259 = vunpack.c.l.b16 %v212
      %v260 = vunpack.c.h.b16 %v212
      %v261 = vunpack.c.l.b16 %v213
      %v262 = vunpack.c.h.b16 %v213
      %v263 = vunpack.c.l.b16 %v214
      %v264 = vunpack.c.h.b16 %v214
      %v265 = vunpack.c.l.b16 %v215
      %v266 = vpack.c.b16 %v245, %v238
      %v267 = vpack.c.b16 %v246, %v239
      %v268 = vpack.c.b16 %v247, %v240
      %v269 = vpack.c.b16 %v248, %v241
      %v270 = vpack.c.b16 %v249, %v242
      %v271 = vpack.c.b16 %v250, %v243
      %v272 = vpack.c.b16 %v251, %v244
      %v273 = vpack.c.b16 %v259, %v252
      %v274 = vpack.c.b16 %v260, %v253
      %v275 = vpack.c.b16 %v261, %v254
      %v276 = vpack.c.b16 %v262, %v255
      %v277 = vpack.c.b16 %v263, %v256
      %v278 = vpack.c.b16 %v264, %v257
      %v279 = vpack.c.b16 %v265, %v258
      %vm287 = vcmask 203776
      %v289 = vsel %vm287, %v199, 0
      %vm291 = vcmask 1043456
      %vm292 = vcmask 1044480
      %v293 = vsel %vm291, 4294967295, 65535
      %v294 = vsel %vm292, %v293, 0
      %v296 = vand.u32 %v273, %v294
      %v299 = vand.u32 %v274, %v294
      %v302 = vand.u32 %v275, %v294
      %v305 = vand.u32 %v276, %v294
      %v308 = vand.u32 %v277, %v294
      %v311 = vand.u32 %v278, %v294
      %v314 = vand.u32 %v279, %v294
      %316 = vmatprep.subr.bf16.mxu0 %v267
      %317 = vmatpush1.bf16.msra.mxu0 %v266
      %318 = vmatprep.subr.bf16.mxu0 %v299
      %319 = vmatpush1.bf16.msra.mxu0 %v296
      %320 = vmatprep.subr.bf16.mxu0 0
      %321 = vmatpush1.bf16.msra.mxu0 0
      %322 = vmatprep.subr.bf16.mxu0 0
      %323 = vmatpush1.bf16.msra.mxu0 0
      %324 = vmatprep.subr.bf16.mxu0 0
      %325 = vmatpush1.bf16.msra.mxu0 0
      %326 = vmatprep.subr.bf16.mxu0 0
      %327 = vmatpush1.bf16.msra.mxu0 0
      %328 = vmatprep.subr.bf16.mxu0 0
      %329 = vmatpush1.bf16.msra.mxu0 0
      %330 = vmatprep.subr.bf16.mxu0 0
      %331 = vmatpush1.bf16.msra.mxu0 0
      %332 = vmatprep.subr.bf16.mxu0 0
      %333 = vmatpush1.bf16.msra.mxu0 0
      %334 = vmatprep.subr.bf16.mxu0 0
      %335 = vmatpush1.bf16.msra.mxu0 0
      %336 = vmatprep.subr.bf16.mxu0 0
      %337 = vmatpush1.bf16.msra.mxu0 0
      %338 = vmatprep.subr.bf16.mxu0 0
      %339 = vmatpush1.bf16.msra.mxu0 0
      %340 = vmatprep.subr.bf16.mxu0 0
      %341 = vmatpush1.bf16.msra.mxu0 0
      %342 = vmatprep.subr.bf16.mxu0 0
      %343 = vmatpush1.bf16.msra.mxu0 0
      %344 = vmatprep.subr.bf16.mxu0 0
      %345 = vmatpush1.bf16.msra.mxu0 0
      %346 = vmatprep.subr.bf16.mxu0 0
      %347 = vmatpush1.bf16.msra.mxu0 0
      %348 = vmatprep.mubr.bf16.mxu0 0
      %349 = vmatmul.mubr.bf16.gmra.mrb[0].mxu0 %v289
      %v350 = vpop.f32.mrb[0].mxu0
      %v351 = vadd.f32 %v220, %v350
      %v352 = vpop.f32.mrb[0].mxu0
      %v353 = vadd.f32 %v220, %v352
      %v354 = vpop.f32.mrb[0].mxu0
      %v355 = vpop.f32.mrb[0].mxu0
      %356 = vdwg.mxu0
      %357 = vmatprep.subr.bf16.mxu0 %v269
      %358 = vmatpush1.bf16.msra.mxu0 %v268
      %359 = vmatprep.subr.bf16.mxu0 %v305
      %360 = vmatpush1.bf16.msra.mxu0 %v302
      %361 = vmatprep.subr.bf16.mxu0 0
      %362 = vmatpush1.bf16.msra.mxu0 0
      %363 = vmatprep.subr.bf16.mxu0 0
      %364 = vmatpush1.bf16.msra.mxu0 0
      %365 = vmatprep.subr.bf16.mxu0 0
      %366 = vmatpush1.bf16.msra.mxu0 0
      %367 = vmatprep.subr.bf16.mxu0 0
      %368 = vmatpush1.bf16.msra.mxu0 0
      %369 = vmatprep.subr.bf16.mxu0 0
      %370 = vmatpush1.bf16.msra.mxu0 0
      %371 = vmatprep.subr.bf16.mxu0 0
      %372 = vmatpush1.bf16.msra.mxu0 0
      %373 = vmatprep.subr.bf16.mxu0 0
      %374 = vmatpush1.bf16.msra.mxu0 0
      %375 = vmatprep.subr.bf16.mxu0 0
      %376 = vmatpush1.bf16.msra.mxu0 0
      %377 = vmatprep.subr.bf16.mxu0 0
      %378 = vmatpush1.bf16.msra.mxu0 0
      %379 = vmatprep.subr.bf16.mxu0 0
      %380 = vmatpush1.bf16.msra.mxu0 0
      %381 = vmatprep.subr.bf16.mxu0 0
      %382 = vmatpush1.bf16.msra.mxu0 0
      %383 = vmatprep.subr.bf16.mxu0 0
      %384 = vmatpush1.bf16.msra.mxu0 0
      %385 = vmatprep.subr.bf16.mxu0 0
      %386 = vmatpush1.bf16.msra.mxu0 0
      %387 = vmatprep.subr.bf16.mxu0 0
      %388 = vmatpush1.bf16.msra.mxu0 0
      %389 = vmatprep.mubr.bf16.mxu0 0
      %390 = vmatmul.mubr.bf16.gmra.mrb[0].mxu0 %v289
      %v391 = vpop.f32.mrb[0].mxu0
      %v392 = vadd.f32 %v220, %v391
      %v393 = vpop.f32.mrb[0].mxu0
      %v394 = vadd.f32 %v220, %v393
      %v395 = vpop.f32.mrb[0].mxu0
      %v396 = vpop.f32.mrb[0].mxu0
      %397 = vdwg.mxu0
      %398 = vmatprep.subr.bf16.mxu0 %v271
      %399 = vmatpush1.bf16.msra.mxu0 %v270
      %400 = vmatprep.subr.bf16.mxu0 %v311
      %401 = vmatpush1.bf16.msra.mxu0 %v308
      %402 = vmatprep.subr.bf16.mxu0 0
      %403 = vmatpush1.bf16.msra.mxu0 0
      %404 = vmatprep.subr.bf16.mxu0 0
      %405 = vmatpush1.bf16.msra.mxu0 0
      %406 = vmatprep.subr.bf16.mxu0 0
      %407 = vmatpush1.bf16.msra.mxu0 0
      %408 = vmatprep.subr.bf16.mxu0 0
      %409 = vmatpush1.bf16.msra.mxu0 0
      %410 = vmatprep.subr.bf16.mxu0 0
      %411 = vmatpush1.bf16.msra.mxu0 0
      %412 = vmatprep.subr.bf16.mxu0 0
      %413 = vmatpush1.bf16.msra.mxu0 0
      %414 = vmatprep.subr.bf16.mxu0 0
      %415 = vmatpush1.bf16.msra.mxu0 0
      %416 = vmatprep.subr.bf16.mxu0 0
      %417 = vmatpush1.bf16.msra.mxu0 0
      %418 = vmatprep.subr.bf16.mxu0 0
      %419 = vmatpush1.bf16.msra.mxu0 0
      %420 = vmatprep.subr.bf16.mxu0 0
      %421 = vmatpush1.bf16.msra.mxu0 0
      %422 = vmatprep.subr.bf16.mxu0 0
      %423 = vmatpush1.bf16.msra.mxu0 0
      %424 = vmatprep.subr.bf16.mxu0 0
      %425 = vmatpush1.bf16.msra.mxu0 0
      %426 = vmatprep.subr.bf16.mxu0 0
      %427 = vmatpush1.bf16.msra.mxu0 0
      %428 = vmatprep.subr.bf16.mxu0 0
      %429 = vmatpush1.bf16.msra.mxu0 0
      %430 = vmatprep.mubr.bf16.mxu0 0
      %431 = vmatmul.mubr.bf16.gmra.mrb[0].mxu0 %v289
      %v432 = vpop.f32.mrb[0].mxu0
      %v433 = vadd.f32 %v220, %v432
      %v434 = vpop.f32.mrb[0].mxu0
      %v435 = vadd.f32 %v220, %v434
      %v436 = vpop.f32.mrb[0].mxu0
      %v437 = vpop.f32.mrb[0].mxu0
      %438 = vdwg.mxu0
      %439 = vmatprep.subr.bf16.mxu0 0
      %440 = vmatpush1.bf16.msra.mxu0 %v272
      %441 = vmatprep.subr.bf16.mxu0 0
      %442 = vmatpush1.bf16.msra.mxu0 %v314
      %443 = vmatprep.subr.bf16.mxu0 0
      %444 = vmatpush1.bf16.msra.mxu0 0
      %445 = vmatprep.subr.bf16.mxu0 0
      %446 = vmatpush1.bf16.msra.mxu0 0
      %447 = vmatprep.subr.bf16.mxu0 0
      %448 = vmatpush1.bf16.msra.mxu0 0
      %449 = vmatprep.subr.bf16.mxu0 0
      %450 = vmatpush1.bf16.msra.mxu0 0
      %451 = vmatprep.subr.bf16.mxu0 0
      %452 = vmatpush1.bf16.msra.mxu0 0
      %453 = vmatprep.subr.bf16.mxu0 0
      %454 = vmatpush1.bf16.msra.mxu0 0
      %455 = vmatprep.subr.bf16.mxu0 0
      %456 = vmatpush1.bf16.msra.mxu0 0
      %457 = vmatprep.subr.bf16.mxu0 0
      %458 = vmatpush1.bf16.msra.mxu0 0
      %459 = vmatprep.subr.bf16.mxu0 0
      %460 = vmatpush1.bf16.msra.mxu0 0
      %461 = vmatprep.subr.bf16.mxu0 0
      %462 = vmatpush1.bf16.msra.mxu0 0
      %463 = vmatprep.subr.bf16.mxu0 0
      %464 = vmatpush1.bf16.msra.mxu0 0
      %465 = vmatprep.subr.bf16.mxu0 0
      %466 = vmatpush1.bf16.msra.mxu0 0
      %467 = vmatprep.subr.bf16.mxu0 0
      %468 = vmatpush1.bf16.msra.mxu0 0
      %469 = vmatprep.subr.bf16.mxu0 0
      %470 = vmatpush1.bf16.msra.mxu0 0
      %471 = vmatprep.mubr.bf16.mxu0 0
      %472 = vmatmul.mubr.bf16.gmra.mrb[0].mxu0 %v289
      %v473 = vpop.f32.mrb[0].mxu0
      %v474 = vadd.f32 %v220, %v473
      %v475 = vpop.f32.mrb[0].mxu0
      %v476 = vpop.f32.mrb[0].mxu0
      %v477 = vpop.f32.mrb[0].mxu0
      %478 = vdwg.mxu0
      %v479 = vsub.f32 0.0, %v351
      %v480 = vsub.f32 0.0, %v353
      %v481 = vsub.f32 0.0, %v392
      %v482 = vsub.f32 0.0, %v394
      %v483 = vsub.f32 0.0, %v433
      %v484 = vsub.f32 0.0, %v435
      %v485 = vsub.f32 0.0, %v474
      %v486 = vmul.f32 %v479, 1.442695
      %v487 = vpow.pop %v486
      %v488 = vmul.f32 %v480, 1.442695
      %v489 = vpow.pop %v488
      %v490 = vmul.f32 %v481, 1.442695
      %v491 = vpow.pop %v490
      %v492 = vmul.f32 %v482, 1.442695
      %v493 = vpow.pop %v492
      %v494 = vmul.f32 %v483, 1.442695
      %v495 = vpow.pop %v494
      %v496 = vmul.f32 %v484, 1.442695
      %v497 = vpow.pop %v496
      %v498 = vmul.f32 %v485, 1.442695
      %v499 = vpow.pop %v498
      %v500 = vadd.f32 %v487, 1.0
      %v501 = vadd.f32 %v489, 1.0
      %v502 = vadd.f32 %v491, 1.0
      %v503 = vadd.f32 %v493, 1.0
      %v504 = vadd.f32 %v495, 1.0
      %v505 = vadd.f32 %v497, 1.0
      %v506 = vadd.f32 %v499, 1.0
      %v507 = vrcp.pop %v500
      %v508 = vrcp.pop %v501
      %v509 = vrcp.pop %v502
      %v510 = vrcp.pop %v503
      %v511 = vrcp.pop %v504
      %v512 = vrcp.pop %v505
      %v513 = vrcp.pop %v506
      %v514 = vld [vmem:[%s3] sm:$0xff]
      %v515 = vld [vmem:[%s3 + $0x8] sm:$0xff]
      %v516 = vld [vmem:[%s3 + $0x10] sm:$0xff]
      %v517 = vld [vmem:[%s3 + $0x18] sm:$0xff]
      %v518 = vld [vmem:[%s3 + $0x20] sm:$0xff]
      %v519 = vld [vmem:[%s3 + $0x28] sm:$0xff]
      %v520 = vld [vmem:[%s3 + $0x30] sm:$0xff]
      %v521 = vld [vmem:[%s3 + $0x38] sm:$0xff]
      %v522 = vld [vmem:[%s3 + $0x40] sm:$0xff]
      %v523 = vld [vmem:[%s3 + $0x48] sm:$0xff]
      %v524 = vld [vmem:[%s3 + $0x50] sm:$0xff]
      %v525 = vld [vmem:[%s3 + $0x58] sm:$0xff]
      %v526 = vld [vmem:[%s3 + $0x60] sm:$0xff]
      %v527 = vld [vmem:[%s3 + $0x68] sm:$0xff]
      %v528 = vld [vmem:[%s3 + $0x70] sm:$0xff]
      %v529 = vld [vmem:[%s3 + $0x78] sm:$0xff]
      %v530 = vld [vmem:[%s3 + $0x80] sm:$0xff]
      %v531 = vld [vmem:[%s3 + $0x88] sm:$0xff]
      %v532 = vld [vmem:[%s3 + $0x90] sm:$0xff]
      %v533 = vld [vmem:[%s3 + $0x98] sm:$0xff]
      %v534 = vld [vmem:[%s3 + $0xa0] sm:$0xff]
      %v535 = vld [vmem:[%s3 + $0xa8] sm:$0xff]
      %v536 = vld [vmem:[%s3 + $0xb0] sm:$0xff]
      %v537 = vld [vmem:[%s3 + $0xb8] sm:$0xff]
      %v538 = vld [vmem:[%s3 + $0xc0] sm:$0xff]
      %v539 = vld [vmem:[%s3 + $0xc8] sm:$0xff]
      %v540 = vld [vmem:[%s3 + $0xd0] sm:$0xff]
      %v541 = vld [vmem:[%s3 + $0xd8] sm:$0xff]
      %v542 = vld [vmem:[%s3 + $0xe0] sm:$0xff]
      %v543 = vld [vmem:[%s3 + $0xe8] sm:$0xff]
      %v544 = vld [vmem:[%s3 + $0xf0] sm:$0xff]
      %v545 = vld [vmem:[%s3 + $0xf8] sm:$0xff]
      %v546 = vld [vmem:[%s3 + $0x100] sm:$0xff]
      %v547 = vld [vmem:[%s3 + $0x108] sm:$0xff]
      %v548 = vld [vmem:[%s3 + $0x110] sm:$0xff]
      %v549 = vld [vmem:[%s3 + $0x118] sm:$0xff]
      %v550 = vld [vmem:[%s3 + $0x120] sm:$0xff]
      %v551 = vld [vmem:[%s3 + $0x128] sm:$0xff]
      %v552 = vld [vmem:[%s3 + $0x130] sm:$0xff]
      %v553 = vld [vmem:[%s3 + $0x138] sm:$0xff]
      %v554 = vld [vmem:[%s3 + $0x140] sm:$0xff]
      %v555 = vld [vmem:[%s3 + $0x148] sm:$0xff]
      %v556 = vld [vmem:[%s3 + $0x150] sm:$0xff]
      %v557 = vld [vmem:[%s3 + $0x158] sm:$0xff]
      %v558 = vld [vmem:[%s3 + $0x160] sm:$0xff]
      %v559 = vld [vmem:[%s3 + $0x168] sm:$0xff]
      %v560 = vld [vmem:[%s3 + $0x170] sm:$0xff]
      %v561 = vld [vmem:[%s3 + $0x178] sm:$0xff]
      %v562 = vld [vmem:[%s3 + $0x180] sm:$0xff]
      %v563 = vld [vmem:[%s3 + $0x188] sm:$0xff]
      %v564 = vld [vmem:[%s3 + $0x190] sm:$0xff]
      %v565 = vld [vmem:[%s3 + $0x198] sm:$0xff]
      %v566 = vld [vmem:[%s3 + $0x1a0] sm:$0xff]
      %v567 = vld [vmem:[%s3 + $0x1a8] sm:$0xff]
      %v568 = vld [vmem:[%s3 + $0x1b0] sm:$0xff]
      %v569 = vld [vmem:[%s3 + $0x1b8] sm:$0xff]
      %v570 = vld [vmem:[%s3 + $0x1c0] sm:$0xff]
      %v571 = vld [vmem:[%s3 + $0x1c8] sm:$0xff]
      %v572 = vld [vmem:[%s3 + $0x1d0] sm:$0xff]
      %v573 = vld [vmem:[%s3 + $0x1d8] sm:$0xff]
      %v574 = vld [vmem:[%s3 + $0x1e0] sm:$0xff]
      %v575 = vld [vmem:[%s3 + $0x1e8] sm:$0xff]
      %v576 = vld [vmem:[%s3 + $0x1f0] sm:$0xff]
      %v577 = vld [vmem:[%s3 + $0x1f8] sm:$0xff]
      %v578 = vld [vmem:[%s3 + $0x200] sm:$0xff]
      %v579 = vld [vmem:[%s3 + $0x208] sm:$0xff]
      %v580 = vld [vmem:[%s3 + $0x210] sm:$0xff]
      %v581 = vld [vmem:[%s3 + $0x218] sm:$0xff]
      %v582 = vld [vmem:[%s3 + $0x220] sm:$0xff]
      %v583 = vld [vmem:[%s3 + $0x228] sm:$0xff]
      %v584 = vld [vmem:[%s3 + $0x230] sm:$0xff]
      %v585 = vld [vmem:[%s3 + $0x238] sm:$0xff]
      %v586 = vld [vmem:[%s3 + $0x240] sm:$0xff]
      %v587 = vld [vmem:[%s3 + $0x248] sm:$0xff]
      %v588 = vld [vmem:[%s3 + $0x250] sm:$0xff]
      %v589 = vld [vmem:[%s3 + $0x258] sm:$0xff]
      %v590 = vld [vmem:[%s3 + $0x260] sm:$0xff]
      %v591 = vld [vmem:[%s3 + $0x268] sm:$0xff]
      %v592 = vld [vmem:[%s3 + $0x270] sm:$0xff]
      %v593 = vld [vmem:[%s3 + $0x278] sm:$0xff]
      %v594 = vld [vmem:[%s3 + $0x280] sm:$0xff]
      %v595 = vld [vmem:[%s3 + $0x288] sm:$0xff]
      %v596 = vld [vmem:[%s3 + $0x290] sm:$0xff]
      %v597 = vld [vmem:[%s3 + $0x298] sm:$0xff]
      %v598 = vld [vmem:[%s3 + $0x2a0] sm:$0xff]
      %v599 = vld [vmem:[%s3 + $0x2a8] sm:$0xff]
      %v600 = vld [vmem:[%s3 + $0x2b0] sm:$0xff]
      %v601 = vld [vmem:[%s3 + $0x2b8] sm:$0xff]
      %v602 = vld [vmem:[%s3 + $0x2c0] sm:$0xff]
      %v603 = vld [vmem:[%s3 + $0x2c8] sm:$0xff]
      %v604 = vld [vmem:[%s3 + $0x2d0] sm:$0xff]
      %v605 = vld [vmem:[%s3 + $0x2d8] sm:$0xff]
      %v606 = vld [vmem:[%s3 + $0x2e0] sm:$0xff]
      %v607 = vld [vmem:[%s3 + $0x2e8] sm:$0xff]
      %v608 = vld [vmem:[%s3 + $0x2f0] sm:$0xff]
      %v609 = vld [vmem:[%s3 + $0x2f8] sm:$0xff]
      %v610 = vld [vmem:[%s3 + $0x300] sm:$0xff]
      %v611 = vld [vmem:[%s3 + $0x308] sm:$0xff]
      %v612 = vld [vmem:[%s3 + $0x310] sm:$0xff]
      %v613 = vld [vmem:[%s3 + $0x318] sm:$0xff]
      %v614 = vld [vmem:[%s3 + $0x320] sm:$0xff]
      %v615 = vld [vmem:[%s3 + $0x328] sm:$0xff]
      %v616 = vld [vmem:[%s3 + $0x330] sm:$0xff]
      %v617 = vld [vmem:[%s3 + $0x338] sm:$0xff]
      %v618 = vld [vmem:[%s3 + $0x340] sm:$0xff]
      %v619 = vld [vmem:[%s3 + $0x348] sm:$0xff]
      %v620 = vld [vmem:[%s3 + $0x350] sm:$0xff]
      %v621 = vld [vmem:[%s3 + $0x358] sm:$0xff]
      %v622 = vld [vmem:[%s3 + $0x360] sm:$0xff]
      %v623 = vld [vmem:[%s3 + $0x368] sm:$0xff]
      %v624 = vld [vmem:[%s3 + $0x370] sm:$0xff]
      %v625 = vld [vmem:[%s3 + $0x378] sm:$0xff]
      %v626 = vld [vmem:[%s3 + $0x380] sm:$0xff]
      %v627 = vld [vmem:[%s3 + $0x388] sm:$0xff]
      %v628 = vld [vmem:[%s3 + $0x390] sm:$0xff]
      %v629 = vld [vmem:[%s3 + $0x398] sm:$0xff]
      %v630 = vld [vmem:[%s3 + $0x3a0] sm:$0xff]
      %v631 = vld [vmem:[%s3 + $0x3a8] sm:$0xff]
      %v632 = vld [vmem:[%s3 + $0x3b0] sm:$0xff]
      %v633 = vld [vmem:[%s3 + $0x3b8] sm:$0xff]
      %v634 = vld [vmem:[%s3 + $0x3c0] sm:$0xff]
      %v635 = vld [vmem:[%s3 + $0x3c8] sm:$0xff]
      %v636 = vld [vmem:[%s3 + $0x3d0] sm:$0xff]
      %v637 = vld [vmem:[%s3 + $0x3d8] sm:$0xff]
      %v638 = vld [vmem:[%s3 + $0x3e0] sm:$0xff]
      %v639 = vld [vmem:[%s3 + $0x3e8] sm:$0xff]
      %v640 = vld [vmem:[%s3 + $0x3f0] sm:$0xff]
      %v641 = vld [vmem:[%s3 + $0x3f8] sm:$0xff]
      %v642 = vld [vmem:[%s3 + $0x400] sm:$0xff]
      %v643 = vld [vmem:[%s3 + $0x408] sm:$0xff]
      %v644 = vld [vmem:[%s3 + $0x410] sm:$0xff]
      %v645 = vld [vmem:[%s3 + $0x418] sm:$0xff]
      %v646 = vld [vmem:[%s3 + $0x420] sm:$0xff]
      %v647 = vld [vmem:[%s3 + $0x428] sm:$0xff]
      %v648 = vld [vmem:[%s3 + $0x430] sm:$0xff]
      %v649 = vld [vmem:[%s3 + $0x438] sm:$0xff]
      %v650 = vld [vmem:[%s3 + $0x440] sm:$0xff]
      %v651 = vld [vmem:[%s3 + $0x448] sm:$0xff]
      %v652 = vld [vmem:[%s3 + $0x450] sm:$0xff]
      %v653 = vld [vmem:[%s3 + $0x458] sm:$0xff]
      %v654 = vld [vmem:[%s3 + $0x460] sm:$0xff]
      %v655 = vld [vmem:[%s3 + $0x468] sm:$0xff]
      %v656 = vld [vmem:[%s3 + $0x470] sm:$0xff]
      %v657 = vld [vmem:[%s3 + $0x478] sm:$0xff]
      %v658 = vld [vmem:[%s3 + $0x480] sm:$0xff]
      %v659 = vld [vmem:[%s3 + $0x488] sm:$0xff]
      %v660 = vld [vmem:[%s3 + $0x490] sm:$0xff]
      %v661 = vld [vmem:[%s3 + $0x498] sm:$0xff]
      %v662 = vld [vmem:[%s3 + $0x4a0] sm:$0xff]
      %v663 = vld [vmem:[%s3 + $0x4a8] sm:$0xff]
      %v664 = vld [vmem:[%s3 + $0x4b0] sm:$0xff]
      %v665 = vld [vmem:[%s3 + $0x4b8] sm:$0xff]
      %v666 = vld [vmem:[%s3 + $0x4c0] sm:$0xff]
      %v667 = vld [vmem:[%s3 + $0x4c8] sm:$0xff]
      %v668 = vld [vmem:[%s3 + $0x4d0] sm:$0xff]
      %v669 = vld [vmem:[%s3 + $0x4d8] sm:$0xff]
      %v670 = vld [vmem:[%s3 + $0x4e0] sm:$0xff]
      %v671 = vld [vmem:[%s3 + $0x4e8] sm:$0xff]
      %v672 = vld [vmem:[%s3 + $0x4f0] sm:$0xff]
      %v673 = vld [vmem:[%s3 + $0x4f8] sm:$0xff]
      %v674 = vld [vmem:[%s3 + $0x500] sm:$0xff]
      %v675 = vld [vmem:[%s3 + $0x508] sm:$0xff]
      %v676 = vld [vmem:[%s3 + $0x510] sm:$0xff]
      %v677 = vld [vmem:[%s3 + $0x518] sm:$0xff]
      %v678 = vld [vmem:[%s3 + $0x520] sm:$0xff]
      %v679 = vld [vmem:[%s3 + $0x528] sm:$0xff]
      %v680 = vld [vmem:[%s3 + $0x530] sm:$0xff]
      %v681 = vld [vmem:[%s3 + $0x538] sm:$0xff]
      %v682 = vld [vmem:[%s3 + $0x540] sm:$0xff]
      %v683 = vld [vmem:[%s3 + $0x548] sm:$0xff]
      %v684 = vld [vmem:[%s3 + $0x550] sm:$0xff]
      %v685 = vld [vmem:[%s3 + $0x558] sm:$0xff]
      %v686 = vld [vmem:[%s3 + $0x560] sm:$0xff]
      %v687 = vld [vmem:[%s3 + $0x568] sm:$0xff]
      %v688 = vld [vmem:[%s3 + $0x570] sm:$0xff]
      %v689 = vld [vmem:[%s3 + $0x578] sm:$0xff]
      %v690 = vld [vmem:[%s3 + $0x580] sm:$0xff]
      %v691 = vld [vmem:[%s3 + $0x588] sm:$0xff]
      %v692 = vld [vmem:[%s3 + $0x590] sm:$0xff]
      %v693 = vld [vmem:[%s3 + $0x598] sm:$0xff]
      %v694 = vld [vmem:[%s3 + $0x5a0] sm:$0xff]
      %v695 = vld [vmem:[%s3 + $0x5a8] sm:$0xff]
      %v696 = vld [vmem:[%s3 + $0x5b0] sm:$0xff]
      %v697 = vld [vmem:[%s3 + $0x5b8] sm:$0xff]
      %v698 = vld [vmem:[%s3 + $0x5c0] sm:$0xff]
      %v699 = vld [vmem:[%s3 + $0x5c8] sm:$0xff]
      %v700 = vld [vmem:[%s3 + $0x5d0] sm:$0xff]
      %v701 = vld [vmem:[%s3 + $0x5d8] sm:$0xff]
      %v702 = vld [vmem:[%s3 + $0x5e0] sm:$0xff]
      %v703 = vld [vmem:[%s3 + $0x5e8] sm:$0xff]
      %v704 = vld [vmem:[%s3 + $0x5f0] sm:$0xff]
      %v705 = vld [vmem:[%s3 + $0x5f8] sm:$0xff]
      %v706 = vld [vmem:[%s3 + $0x600] sm:$0xff]
      %v707 = vld [vmem:[%s3 + $0x608] sm:$0xff]
      %v708 = vld [vmem:[%s3 + $0x610] sm:$0xff]
      %v709 = vld [vmem:[%s3 + $0x618] sm:$0xff]
      %vm710 = vcmask 130048
      %v712 = vsel %vm710, %v513, 0
      %714 = vmatprep.subr.mxu0 %v515
      %715 = vmatpush1.msra.mxu0 %v514
      %716 = vmatprep.subr.mxu0 %v517
      %717 = vmatpush1.msra.mxu0 %v516
      %718 = vmatprep.subr.mxu0 %v519
      %719 = vmatpush1.msra.mxu0 %v518
      %720 = vmatprep.subr.mxu0 %v521
      %721 = vmatpush1.msra.mxu0 %v520
      %722 = vmatprep.subr.mxu0 %v523
      %723 = vmatpush1.msra.mxu0 %v522
      %724 = vmatprep.subr.mxu0 %v525
      %725 = vmatpush1.msra.mxu0 %v524
      %726 = vmatprep.subr.mxu0 %v527
      %727 = vmatpush1.msra.mxu0 %v526
      %728 = vmatprep.subr.mxu0 %v529
      %729 = vmatpush1.msra.mxu0 %v528
      %730 = vmatprep.subr.mxu0 %v531
      %731 = vmatpush1.msra.mxu0 %v530
      %732 = vmatprep.subr.mxu0 %v533
      %733 = vmatpush1.msra.mxu0 %v532
      %734 = vmatprep.subr.mxu0 %v535
      %735 = vmatpush1.msra.mxu0 %v534
      %736 = vmatprep.subr.mxu0 %v537
      %737 = vmatpush1.msra.mxu0 %v536
      %738 = vmatprep.subr.mxu0 %v539
      %739 = vmatpush1.msra.mxu0 %v538
      %740 = vmatprep.subr.mxu0 %v541
      %741 = vmatpush1.msra.mxu0 %v540
      %742 = vmatprep.subr.mxu0 %v543
      %743 = vmatpush1.msra.mxu0 %v542
      %744 = vmatprep.subr.mxu0 %v545
      %745 = vmatpush1.msra.mxu0 %v544
      %746 = vmatprep.subr.mxu0 %v547
      %747 = vmatpush1.msra.mxu0 %v546
      %748 = vmatprep.subr.mxu0 %v549
      %749 = vmatpush1.msra.mxu0 %v548
      %750 = vmatprep.subr.mxu0 %v551
      %751 = vmatpush1.msra.mxu0 %v550
      %752 = vmatprep.subr.mxu0 %v553
      %753 = vmatpush1.msra.mxu0 %v552
      %754 = vmatprep.subr.mxu0 %v555
      %755 = vmatpush1.msra.mxu0 %v554
      %756 = vmatprep.subr.mxu0 %v557
      %757 = vmatpush1.msra.mxu0 %v556
      %758 = vmatprep.subr.mxu0 %v559
      %759 = vmatpush1.msra.mxu0 %v558
      %760 = vmatprep.subr.mxu0 %v561
      %761 = vmatpush1.msra.mxu0 %v560
      %762 = vmatprep.subr.mxu0 %v563
      %763 = vmatpush1.msra.mxu0 %v562
      %764 = vmatprep.subr.mxu0 %v565
      %765 = vmatpush1.msra.mxu0 %v564
      %766 = vmatprep.subr.mxu0 %v567
      %767 = vmatpush1.msra.mxu0 %v566
      %768 = vmatprep.subr.mxu0 %v569
      %769 = vmatpush1.msra.mxu0 %v568
      %770 = vmatprep.subr.mxu0 %v571
      %771 = vmatpush1.msra.mxu0 %v570
      %772 = vmatprep.subr.mxu0 %v573
      %773 = vmatpush1.msra.mxu0 %v572
      %774 = vmatprep.subr.mxu0 %v575
      %775 = vmatpush1.msra.mxu0 %v574
      %776 = vmatprep.subr.mxu0 %v577
      %777 = vmatpush1.msra.mxu0 %v576
      %778 = vmatprep.mubr.f32.mxu0 %v508
      %779 = vmatmul.mubr.f32.gmra.mrb[0].mxu0 %v507
      %v780 = vpop.f32.mrb[0].mxu0
      %v781 = vadd.f32 0.0, %v780
      %v782 = vpop.f32.mrb[0].mxu0
      %v783 = vadd.f32 0.0, %v782
      %784 = vdwg.mxu0
      %785 = vmatprep.subr.mxu0 %v579
      %786 = vmatpush1.msra.mxu0 %v578
      %787 = vmatprep.subr.mxu0 %v581
      %788 = vmatpush1.msra.mxu0 %v580
      %789 = vmatprep.subr.mxu0 %v583
      %790 = vmatpush1.msra.mxu0 %v582
      %791 = vmatprep.subr.mxu0 %v585
      %792 = vmatpush1.msra.mxu0 %v584
      %793 = vmatprep.subr.mxu0 %v587
      %794 = vmatpush1.msra.mxu0 %v586
      %795 = vmatprep.subr.mxu0 %v589
      %796 = vmatpush1.msra.mxu0 %v588
      %797 = vmatprep.subr.mxu0 %v591
      %798 = vmatpush1.msra.mxu0 %v590
      %799 = vmatprep.subr.mxu0 %v593
      %800 = vmatpush1.msra.mxu0 %v592
      %801 = vmatprep.subr.mxu0 %v595
      %802 = vmatpush1.msra.mxu0 %v594
      %803 = vmatprep.subr.mxu0 %v597
      %804 = vmatpush1.msra.mxu0 %v596
      %805 = vmatprep.subr.mxu0 %v599
      %806 = vmatpush1.msra.mxu0 %v598
      %807 = vmatprep.subr.mxu0 %v601
      %808 = vmatpush1.msra.mxu0 %v600
      %809 = vmatprep.subr.mxu0 %v603
      %810 = vmatpush1.msra.mxu0 %v602
      %811 = vmatprep.subr.mxu0 %v605
      %812 = vmatpush1.msra.mxu0 %v604
      %813 = vmatprep.subr.mxu0 %v607
      %814 = vmatpush1.msra.mxu0 %v606
      %815 = vmatprep.subr.mxu0 %v609
      %816 = vmatpush1.msra.mxu0 %v608
      %817 = vmatprep.subr.mxu0 %v611
      %818 = vmatpush1.msra.mxu0 %v610
      %819 = vmatprep.subr.mxu0 %v613
      %820 = vmatpush1.msra.mxu0 %v612
      %821 = vmatprep.subr.mxu0 %v615
      %822 = vmatpush1.msra.mxu0 %v614
      %823 = vmatprep.subr.mxu0 %v617
      %824 = vmatpush1.msra.mxu0 %v616
      %825 = vmatprep.subr.mxu0 %v619
      %826 = vmatpush1.msra.mxu0 %v618
      %827 = vmatprep.subr.mxu0 %v621
      %828 = vmatpush1.msra.mxu0 %v620
      %829 = vmatprep.subr.mxu0 %v623
      %830 = vmatpush1.msra.mxu0 %v622
      %831 = vmatprep.subr.mxu0 %v625
      %832 = vmatpush1.msra.mxu0 %v624
      %833 = vmatprep.subr.mxu0 %v627
      %834 = vmatpush1.msra.mxu0 %v626
      %835 = vmatprep.subr.mxu0 %v629
      %836 = vmatpush1.msra.mxu0 %v628
      %837 = vmatprep.subr.mxu0 %v631
      %838 = vmatpush1.msra.mxu0 %v630
      %839 = vmatprep.subr.mxu0 %v633
      %840 = vmatpush1.msra.mxu0 %v632
      %841 = vmatprep.subr.mxu0 %v635
      %842 = vmatpush1.msra.mxu0 %v634
      %843 = vmatprep.subr.mxu0 %v637
      %844 = vmatpush1.msra.mxu0 %v636
      %845 = vmatprep.subr.mxu0 %v639
      %846 = vmatpush1.msra.mxu0 %v638
      %847 = vmatprep.subr.mxu0 %v641
      %848 = vmatpush1.msra.mxu0 %v640
      %849 = vmatprep.mubr.f32.mxu0 %v510
      %850 = vmatmul.mubr.f32.gmra.mrb[0].mxu0 %v509
      %v851 = vpop.f32.mrb[0].mxu0
      %v852 = vadd.f32 %v781, %v851
      %v853 = vpop.f32.mrb[0].mxu0
      %v854 = vadd.f32 %v783, %v853
      %855 = vdwg.mxu0
      %856 = vmatprep.subr.mxu0 %v643
      %857 = vmatpush1.msra.mxu0 %v642
      %858 = vmatprep.subr.mxu0 %v645
      %859 = vmatpush1.msra.mxu0 %v644
      %860 = vmatprep.subr.mxu0 %v647
      %861 = vmatpush1.msra.mxu0 %v646
      %862 = vmatprep.subr.mxu0 %v649
      %863 = vmatpush1.msra.mxu0 %v648
      %864 = vmatprep.subr.mxu0 %v651
      %865 = vmatpush1.msra.mxu0 %v650
      %866 = vmatprep.subr.mxu0 %v653
      %867 = vmatpush1.msra.mxu0 %v652
      %868 = vmatprep.subr.mxu0 %v655
      %869 = vmatpush1.msra.mxu0 %v654
      %870 = vmatprep.subr.mxu0 %v657
      %871 = vmatpush1.msra.mxu0 %v656
      %872 = vmatprep.subr.mxu0 %v659
      %873 = vmatpush1.msra.mxu0 %v658
      %874 = vmatprep.subr.mxu0 %v661
      %875 = vmatpush1.msra.mxu0 %v660
      %876 = vmatprep.subr.mxu0 %v663
      %877 = vmatpush1.msra.mxu0 %v662
      %878 = vmatprep.subr.mxu0 %v665
      %879 = vmatpush1.msra.mxu0 %v664
      %880 = vmatprep.subr.mxu0 %v667
      %881 = vmatpush1.msra.mxu0 %v666
      %882 = vmatprep.subr.mxu0 %v669
      %883 = vmatpush1.msra.mxu0 %v668
      %884 = vmatprep.subr.mxu0 %v671
      %885 = vmatpush1.msra.mxu0 %v670
      %886 = vmatprep.subr.mxu0 %v673
      %887 = vmatpush1.msra.mxu0 %v672
      %888 = vmatprep.subr.mxu0 %v675
      %889 = vmatpush1.msra.mxu0 %v674
      %890 = vmatprep.subr.mxu0 %v677
      %891 = vmatpush1.msra.mxu0 %v676
      %892 = vmatprep.subr.mxu0 %v679
      %893 = vmatpush1.msra.mxu0 %v678
      %894 = vmatprep.subr.mxu0 %v681
      %895 = vmatpush1.msra.mxu0 %v680
      %896 = vmatprep.subr.mxu0 %v683
      %897 = vmatpush1.msra.mxu0 %v682
      %898 = vmatprep.subr.mxu0 %v685
      %899 = vmatpush1.msra.mxu0 %v684
      %900 = vmatprep.subr.mxu0 %v687
      %901 = vmatpush1.msra.mxu0 %v686
      %902 = vmatprep.subr.mxu0 %v689
      %903 = vmatpush1.msra.mxu0 %v688
      %904 = vmatprep.subr.mxu0 %v691
      %905 = vmatpush1.msra.mxu0 %v690
      %906 = vmatprep.subr.mxu0 %v693
      %907 = vmatpush1.msra.mxu0 %v692
      %908 = vmatprep.subr.mxu0 %v695
      %909 = vmatpush1.msra.mxu0 %v694
      %910 = vmatprep.subr.mxu0 %v697
      %911 = vmatpush1.msra.mxu0 %v696
      %912 = vmatprep.subr.mxu0 %v699
      %913 = vmatpush1.msra.mxu0 %v698
      %914 = vmatprep.subr.mxu0 %v701
      %915 = vmatpush1.msra.mxu0 %v700
      %916 = vmatprep.subr.mxu0 %v703
      %917 = vmatpush1.msra.mxu0 %v702
      %918 = vmatprep.subr.mxu0 %v705
      %919 = vmatpush1.msra.mxu0 %v704
      %920 = vmatprep.mubr.f32.mxu0 %v512
      %921 = vmatmul.mubr.f32.gmra.mrb[0].mxu0 %v511
      %v922 = vpop.f32.mrb[0].mxu0
      %v923 = vadd.f32 %v852, %v922
      %v924 = vpop.f32.mrb[0].mxu0
      %v925 = vadd.f32 %v854, %v924
      %926 = vdwg.mxu0
      %927 = vmatprep.subr.mxu0 %v707
      %928 = vmatpush1.msra.mxu0 %v706
      %929 = vmatprep.subr.mxu0 %v709
      %930 = vmatpush1.msra.mxu0 %v708
      %931 = vmatprep.subr.mxu0 0.0
      %932 = vmatpush1.msra.mxu0 0.0
      %933 = vmatprep.subr.mxu0 0.0
      %934 = vmatpush1.msra.mxu0 0.0
      %935 = vmatprep.subr.mxu0 0.0
      %936 = vmatpush1.msra.mxu0 0.0
      %937 = vmatprep.subr.mxu0 0.0
      %938 = vmatpush1.msra.mxu0 0.0
      %939 = vmatprep.subr.mxu0 0.0
      %940 = vmatpush1.msra.mxu0 0.0
      %941 = vmatprep.subr.mxu0 0.0
      %942 = vmatpush1.msra.mxu0 0.0
      %943 = vmatprep.subr.mxu0 0.0
      %944 = vmatpush1.msra.mxu0 0.0
      %945 = vmatprep.subr.mxu0 0.0
      %946 = vmatpush1.msra.mxu0 0.0
      %947 = vmatprep.subr.mxu0 0.0
      %948 = vmatpush1.msra.mxu0 0.0
      %949 = vmatprep.subr.mxu0 0.0
      %950 = vmatpush1.msra.mxu0 0.0
      %951 = vmatprep.subr.mxu0 0.0
      %952 = vmatpush1.msra.mxu0 0.0
      %953 = vmatprep.subr.mxu0 0.0
      %954 = vmatpush1.msra.mxu0 0.0
      %955 = vmatprep.subr.mxu0 0.0
      %956 = vmatpush1.msra.mxu0 0.0
      %957 = vmatprep.subr.mxu0 0.0
      %958 = vmatpush1.msra.mxu0 0.0
      %959 = vmatprep.subr.mxu0 0.0
      %960 = vmatpush1.msra.mxu0 0.0
      %961 = vmatprep.subr.mxu0 0.0
      %962 = vmatpush1.msra.mxu0 0.0
      %963 = vmatprep.subr.mxu0 0.0
      %964 = vmatpush1.msra.mxu0 0.0
      %965 = vmatprep.subr.mxu0 0.0
      %966 = vmatpush1.msra.mxu0 0.0
      %967 = vmatprep.subr.mxu0 0.0
      %968 = vmatpush1.msra.mxu0 0.0
      %969 = vmatprep.subr.mxu0 0.0
      %970 = vmatpush1.msra.mxu0 0.0
      %971 = vmatprep.subr.mxu0 0.0
      %972 = vmatpush1.msra.mxu0 0.0
      %973 = vmatprep.subr.mxu0 0.0
      %974 = vmatpush1.msra.mxu0 0.0
      %975 = vmatprep.subr.mxu0 0.0
      %976 = vmatpush1.msra.mxu0 0.0
      %977 = vmatprep.subr.mxu0 0.0
      %978 = vmatpush1.msra.mxu0 0.0
      %979 = vmatprep.subr.mxu0 0.0
      %980 = vmatpush1.msra.mxu0 0.0
      %981 = vmatprep.subr.mxu0 0.0
      %982 = vmatpush1.msra.mxu0 0.0
      %983 = vmatprep.subr.mxu0 0.0
      %984 = vmatpush1.msra.mxu0 0.0
      %985 = vmatprep.subr.mxu0 0.0
      %986 = vmatpush1.msra.mxu0 0.0
      %987 = vmatprep.subr.mxu0 0.0
      %988 = vmatpush1.msra.mxu0 0.0
      %989 = vmatprep.subr.mxu0 0.0
      %990 = vmatpush1.msra.mxu0 0.0
      %991 = vmatprep.mubr.f32.mxu0 0.0
      %992 = vmatmul.mubr.f32.gmra.mrb[0].mxu0 %v712
      %v993 = vpop.f32.mrb[0].mxu0
      %v994 = vadd.f32 %v923, %v993
      %v995 = vpop.f32.mrb[0].mxu0
      %v996 = vadd.f32 %v925, %v995
      %997 = vdwg.mxu0
      %998 = vst [vmem:[%s197] sm:$0x3f] %v994
      %vm999 = vcmask 553984
      %1000 = vst.msk [vmem:[%s197 + $0x8] sm:$0x3f] %vm999, %v996
      %p1001 = scmp.lt.s32.totalorder %s15, 1
      %s1002 = scalar_select %p1001, %s15, 1
      %s1003 = smul.addr %s1002, 2
      %s1004 = smul.addr %s1003, 8
      %s1005 = scalar_lea.vmem %s4, %s1004
      // Predicated region
      $region37: #{lenet_forward.3} parent=35 // pred_check
        %p1006 = pneg %p122
      $region38: #{lenet_forward.3} parent=35 // pred_check_branch
        %1008 = sbr.rel (%p1006) target = $region40
      $region39: #{lenet_forward.3} parent=35 // pred_region
        _
      $region40: #{lenet_forward.3} parent=35 // pred_fallthru
        _
    $region36: #{lenet_forward.3} parent=5 // pred_fallthru
      _
    %p1009 = scmp.le.s32.totalorder 2, %s10
    // Predicated region
    $region41: #{lenet_forward.3} parent=5 // pred_check
      %p1010 = pneg %p1009
    $region42: #{lenet_forward.3} parent=5 // pred_check_branch
      %1012 = sbr.rel (%p1010) target = $region44
    $region43: #{lenet_forward.3} parent=5 // pred_region
      %s1013 = ssub.s32 %s10, 2
      // Predicated region
      $region45: #{lenet_forward.3} parent=43 // pred_check
        %p1014 = pneg %p128
      $region46: #{lenet_forward.3} parent=43 // pred_check_branch
        %1016 = sbr.rel (%p1014) target = $region48
      $region47: #{lenet_forward.3} parent=43 // pred_region
        %p1017 = scmp.lt.s32.totalorder %s16, 1
        %s1018 = scalar_select %p1017, %s16, 1
        %s1019 = smul.addr %s1018, 2
        %s1020 = smul.addr %s1019, 8
        %s1021 = scalar_lea.vmem %s4, %s1020
      $region48: #{lenet_forward.3} parent=43 // pred_fallthru
        _
    $region44: #{lenet_forward.3} parent=5 // pred_fallthru
      _
  $region6: #{lenet_forward.3} parent=0 // loop_footer
    %s14 = sadd.s32 1, %s10
  $region7: #{lenet_forward.3} parent=0 // loop_footer_branch
    %9 = sbr.rel target = $region3
  $region8: #{lenet_forward.3} parent=0 // loop_exit
    _

// kernel: lenet_forward.4
$region0: #{lenet_forward.4}
  #allocation0 [shape = 'u32[]', space=smem, size = 0x4, offset = 0x4, fixed_abs, tag = 'smem constant byte address 0x4 - core index']
  #allocation1 [shape = 'u32[144,128]{1,0:T(1,128)}', space=vmem, size = 0x12000, scoped, tag = 'internal scratch']
  %s0 = inlined_call_operand.vmem [shape: bf16[2,150,100], index: 0, kind: input, shape index: {}]
  %s1 = inlined_call_operand.vmem [shape: bf16[16,150], index: 1, kind: input, shape index: {}]
  %s2 = inlined_call_operand.vmem [shape: f32[16,1], index: 2, kind: input, shape index: {}]
  %s3 = inlined_call_operand.vmem [shape: f32[100,25], index: 3, kind: input, shape index: {}]
  %s4 = inlined_call_operand.vmem [shape: f32[2,16,25], index: 4, kind: output, shape index: {}]
  %s5 = sld [smem:[#allocation0]]
  $region49: #{lenet_forward.4} parent=0
    _
  %s7 = ssub.s32 1, %s5
  %s8 = scalar_select 0, %s7, %s5
  loop: start=0, step=1, limit=4
  $region2: #{lenet_forward.4} parent=0 // loop_pre_header
    _
  $region3: #{lenet_forward.4} parent=0 // loop_header
    %s10 = sphi 0, %s14
    %p11 = scmp.ge.s32.totalorder %s10, 4
    %s20 = sphi 0, %s22
    %s23 = sphi 0, %s20
    %s24 = sphi 0, %s23
    %s40 = sphi 0, %s24
    %s44 = sphi 0, %s44
    %s46 = sphi 0, %s44
    %s47 = sphi 0, %s46
    %s61 = sphi 0, %s47
    %s65 = sphi 0, %s65
    %s67 = sphi 0, %s65
    %s68 = sphi 0, %s67
    %s82 = sphi 0, %s68
    %s86 = sphi 0, %s86
    %s88 = sphi 0, %s86
    %s89 = sphi 0, %s88
    %s103 = sphi 0, %s89
    %s109 = sphi 0, %s111
    %s112 = sphi 0, %s109
    %s113 = sphi 0, %s112
    %s129 = sphi 0, %s113
  $region4: #{lenet_forward.4} parent=0 // loop_header_branch
    %13 = sbr.rel (%p11) target = $region8
  $region5: #{lenet_forward.4} parent=0 // loop_body
    %s15 = ssub.s32 %s10, 1
    %s16 = ssub.s32 %s10, 2
    %s17 = sadd.s32 %s10, 1
    %s18 = ssub.s32 %s10, %s17
    %p19 = scmp.eq.s32.totalorder %s18, 0
    %s21 = sadd.s32 %s20, 1
    %s22 = scalar_select %p19, %s20, %s21
    %p25 = pneg %p19
    %p26 = scmp.eq.s32.totalorder %s10, 1
    %p27 = por %p25, %p26
    %p28 = scmp.ne.s32.totalorder %s20, %s23
    %p29 = scmp.eq.s32.totalorder %s10, 0
    %p30 = por %p28, %p29
    %p31 = scmp.ne.s32.totalorder %s20, %s23
    %p32 = scmp.eq.s32.totalorder %s15, 1
    %p33 = por %p31, %p32
    %p34 = scmp.ne.s32.totalorder %s23, %s24
    %p35 = scmp.eq.s32.totalorder %s15, 0
    %p36 = por %p34, %p35
    %p37 = scmp.ne.s32.totalorder %s23, %s24
    %p38 = scmp.eq.s32.totalorder %s16, 1
    %p39 = por %p37, %p38
    %p41 = scmp.ne.s32.totalorder %s24, %s40
    %p42 = scmp.eq.s32.totalorder %s16, 0
    %p43 = por %p41, %p42
    %s45 = sadd.s32 %s44, 1
    %p48 = scmp.eq.s32.totalorder %s10, 1
    %p49 = scmp.ne.s32.totalorder %s44, %s46
    %p50 = scmp.eq.s32.totalorder %s10, 0
    %p51 = por %p49, %p50
    %p52 = scmp.ne.s32.totalorder %s44, %s46
    %p53 = scmp.eq.s32.totalorder %s15, 1
    %p54 = por %p52, %p53
    %p55 = scmp.ne.s32.totalorder %s46, %s47
    %p56 = scmp.eq.s32.totalorder %s15, 0
    %p57 = por %p55, %p56
    %p58 = scmp.ne.s32.totalorder %s46, %s47
    %p59 = scmp.eq.s32.totalorder %s16, 1
    %p60 = por %p58, %p59
    %p62 = scmp.ne.s32.totalorder %s47, %s61
    %p63 = scmp.eq.s32.totalorder %s16, 0
    %p64 = por %p62, %p63
    %s66 = sadd.s32 %s65, 1
    %p69 = scmp.eq.s32.totalorder %s10, 1
    %p70 = scmp.ne.s32.totalorder %s65, %s67
    %p71 = scmp.eq.s32.totalorder %s10, 0
    %p72 = por %p70, %p71
    %p73 = scmp.ne.s32.totalorder %s65, %s67
    %p74 = scmp.eq.s32.totalorder %s15, 1
    %p75 = por %p73, %p74
    %p76 = scmp.ne.s32.totalorder %s67, %s68
    %p77 = scmp.eq.s32.totalorder %s15, 0
    %p78 = por %p76, %p77
    %p79 = scmp.ne.s32.totalorder %s67, %s68
    %p80 = scmp.eq.s32.totalorder %s16, 1
    %p81 = por %p79, %p80
    %p83 = scmp.ne.s32.totalorder %s68, %s82
    %p84 = scmp.eq.s32.totalorder %s16, 0
    %p85 = por %p83, %p84
    %s87 = sadd.s32 %s86, 1
    %p90 = scmp.eq.s32.totalorder %s10, 1
    %p91 = scmp.ne.s32.totalorder %s86, %s88
    %p92 = scmp.eq.s32.totalorder %s10, 0
    %p93 = por %p91, %p92
    %p94 = scmp.ne.s32.totalorder %s86, %s88
    %p95 = scmp.eq.s32.totalorder %s15, 1
    %p96 = por %p94, %p95
    %p97 = scmp.ne.s32.totalorder %s88, %s89
    %p98 = scmp.eq.s32.totalorder %s15, 0
    %p99 = por %p97, %p98
    %p100 = scmp.ne.s32.totalorder %s88, %s89
    %p101 = scmp.eq.s32.totalorder %s16, 1
    %p102 = por %p100, %p101
    %p104 = scmp.ne.s32.totalorder %s89, %s103
    %p105 = scmp.eq.s32.totalorder %s16, 0
    %p106 = por %p104, %p105
    %s107 = ssub.s32 %s10, %s17
    %p108 = scmp.eq.s32.totalorder %s107, 0
    %s110 = sadd.s32 %s109, 1
    %s111 = scalar_select %p108, %s109, %s110
    %p114 = pneg %p108
    %p115 = scmp.eq.s32.totalorder %s10, 1
    %p116 = por %p114, %p115
    %p117 = scmp.ne.s32.totalorder %s109, %s112
    %p118 = scmp.eq.s32.totalorder %s10, 0
    %p119 = por %p117, %p118
    %p120 = scmp.ne.s32.totalorder %s109, %s112
    %p121 = scmp.eq.s32.totalorder %s15, 1
    %p122 = por %p120, %p121
    %p123 = scmp.ne.s32.totalorder %s112, %s113
    %p124 = scmp.eq.s32.totalorder %s15, 0
    %p125 = por %p123, %p124
    %p126 = scmp.ne.s32.totalorder %s112, %s113
    %p127 = scmp.eq.s32.totalorder %s16, 1
    %p128 = por %p126, %p127
    %p130 = scmp.ne.s32.totalorder %s113, %s129
    %p131 = scmp.eq.s32.totalorder %s16, 0
    %p132 = por %p130, %p131
    %p133 = scmp.le.s32.totalorder 1, %s10
    %p134 = scmp.lt.s32.totalorder %s10, 3
    %p135 = pnand %p133, %p134
    %p136 = pneg %p135
    // Predicated region
    $region9: #{lenet_forward.4} parent=5 // pred_check
      _
    $region10: #{lenet_forward.4} parent=5 // pred_check_branch
      %138 = sbr.rel (%p135) target = $region12
    $region11: #{lenet_forward.4} parent=5 // pred_region
      %s139 = ssub.s32 %s10, 1
      // Predicated region
      $region13: #{lenet_forward.4} parent=11 // pred_check
        %p140 = pneg %p57
      $region14: #{lenet_forward.4} parent=11 // pred_check_branch
        %142 = sbr.rel (%p140) target = $region16
      $region15: #{lenet_forward.4} parent=11 // pred_region
        _
      $region16: #{lenet_forward.4} parent=11 // pred_fallthru
        _
      // Predicated region
      $region17: #{lenet_forward.4} parent=11 // pred_check
        %p143 = pneg %p78
      $region18: #{lenet_forward.4} parent=11 // pred_check_branch
        %145 = sbr.rel (%p143) target = $region20
      $region19: #{lenet_forward.4} parent=11 // pred_region
        _
      $region20: #{lenet_forward.4} parent=11 // pred_fallthru
        _
      // Predicated region
      $region21: #{lenet_forward.4} parent=11 // pred_check
        %p146 = pneg %p99
      $region22: #{lenet_forward.4} parent=11 // pred_check_branch
        %148 = sbr.rel (%p146) target = $region24
      $region23: #{lenet_forward.4} parent=11 // pred_region
        _
      $region24: #{lenet_forward.4} parent=11 // pred_fallthru
        _
    $region12: #{lenet_forward.4} parent=5 // pred_fallthru
      _
    %p149 = scmp.lt.s32.totalorder %s10, 2
    // Predicated region
    $region25: #{lenet_forward.4} parent=5 // pred_check
      %p150 = pneg %p149
    $region26: #{lenet_forward.4} parent=5 // pred_check_branch
      %152 = sbr.rel (%p150) target = $region28
    $region27: #{lenet_forward.4} parent=5 // pred_region
      // Predicated region
      $region29: #{lenet_forward.4} parent=27 // pred_check
        %p153 = pneg %p30
      $region30: #{lenet_forward.4} parent=27 // pred_check_branch
        %155 = sbr.rel (%p153) target = $region32
      $region31: #{lenet_forward.4} parent=27 // pred_region
        %p156 = scmp.lt.s32.totalorder %s10, 1
        %s157 = scalar_select %p156, %s10, 1
        %s158 = smul.addr %s157, 19
        %s159 = smul.addr %s158, 4
        %s160 = scalar_lea.vmem %s0, %s159
      $region32: #{lenet_forward.4} parent=27 // pred_fallthru
        _
    $region28: #{lenet_forward.4} parent=5 // pred_fallthru
      _
    %p161 = scmp.le.s32.totalorder 1, %s10
    %p162 = scmp.lt.s32.totalorder %s10, 3
    %p163 = pnand %p161, %p162
    %p164 = pneg %p163
    // Predicated region
    $region33: #{lenet_forward.4} parent=5 // pred_check
      _
    $region34: #{lenet_forward.4} parent=5 // pred_check_branch
      %166 = sbr.rel (%p163) target = $region36
    $region35: #{lenet_forward.4} parent=5 // pred_region
      %s167 = ssub.s32 %s10, 1
      %p168 = scmp.lt.s32.totalorder %s15, 1
      %s169 = scalar_select %p168, %s15, 1
      %s170 = smul.addr %s169, 19
      %s171 = smul.addr %s170, 4
      %s172 = scalar_lea.vmem %s0, %s171
      %p173 = pneg %p36
      %p174 = pneg %p33
      %p175 = pneg %p57
      %p176 = pneg %p54
      %p177 = pneg %p78
      %p178 = pneg %p75
      %p179 = pneg %p99
      %p180 = pneg %p96
      %p181 = pneg %p125
      %p182 = pneg %p122
      %p183 = scmp.lt.s32.totalorder %s15, 1
      %s184 = scalar_select %p183, %s15, 1
      %s185 = smul.addr %s184, 2
      %s186 = smul.addr %s185, 8
      %s187 = scalar_lea.vmem %s4, %s186
      %p188 = scmp.lt.s32.totalorder %s15, 1
      %s189 = scalar_select %p188, %s15, 1
      %s190 = smul.addr %s189, 19
      %s191 = smul.addr %s190, 4
      %s192 = scalar_lea.vmem %s0, %s191
      %p193 = scmp.lt.s32.totalorder %s15, 1
      %s194 = scalar_select %p193, %s15, 1
      %s195 = smul.addr %s194, 2
      %s196 = smul.addr %s195, 8
      %s197 = scalar_lea.vmem %s4, %s196
      %v199 = vld [vmem:[%s1] sm:$0xff]
      %v200 = vld [vmem:[%s1 + $0x8] sm:$0xff]
      %v201 = vld [vmem:[%s192] sm:$0xf]
      %v202 = vld [vmem:[%s192 + $0x4] sm:$0xf]
      %v203 = vld [vmem:[%s192 + $0x8] sm:$0xf]
      %v204 = vld [vmem:[%s192 + $0xc] sm:$0xf]
      %v205 = vld [vmem:[%s192 + $0x10] sm:$0xf]
      %v206 = vld [vmem:[%s192 + $0x14] sm:$0xf]
      %v207 = vld [vmem:[%s192 + $0x18] sm:$0xf]
      %v208 = vld [vmem:[%s192 + $0x1c] sm:$0xf]
      %v209 = vld [vmem:[%s192 + $0x20] sm:$0xf]
      %v210 = vld [vmem:[%s192 + $0x24] sm:$0xf]
      %v211 = vld [vmem:[%s192 + $0x28] sm:$0xf]
      %v212 = vld [vmem:[%s192 + $0x2c] sm:$0xf]
      %v213 = vld [vmem:[%s192 + $0x30] sm:$0xf]
      %v214 = vld [vmem:[%s192 + $0x34] sm:$0xf]
      %v215 = vld [vmem:[%s192 + $0x38] sm:$0xf]
      %v216 = vld [vmem:[%s192 + $0x3c] sm:$0xf]
      %v217 = vld [vmem:[%s192 + $0x40] sm:$0xf]
      %v218 = vld [vmem:[%s192 + $0x44] sm:$0xf]
      %v219 = vld [vmem:[%s192 + $0x48] sm:$0x7]
      %v220 = vld [vmem:[%s2] sm:$0xff]
      %v221 = vld [vmem:[%s2 + $0x8] sm:$0xff]
      %223 = vset.pattern.permute.xlu0 0
      %224 = vperm.xlu0 %223, %v220
      %v225 = vpop.permute.xlu0 %224
      %228 = vset.pattern.permute.xlu0 0
      %229 = vperm.xlu0 %228, %v221
      %v230 = vpop.permute.xlu0 %229
      %v234 = vunpack.c.l.b16 %v199
      %v235 = vunpack.c.h.b16 %v199
      %v236 = vunpack.c.l.b16 %v200
      %v237 = vunpack.c.h.b16 %v200
      %v238 = vpack.c.b16 %v236, %v234
      %v239 = vpack.c.b16 %v237, %v235
      %v260 = vunpack.c.l.b16 %v201
      %v261 = vunpack.c.l.b16 %v202
      %v262 = vunpack.c.l.b16 %v203
      %v263 = vunpack.c.l.b16 %v204
      %v264 = vunpack.c.l.b16 %v205
      %v265 = vunpack.c.l.b16 %v206
      %v266 = vunpack.c.l.b16 %v207
      %v267 = vunpack.c.l.b16 %v208
      %v268 = vunpack.c.l.b16 %v209
      %v269 = vunpack.c.l.b16 %v210
      %v270 = vunpack.c.l.b16 %v211
      %v271 = vunpack.c.l.b16 %v212
      %v272 = vunpack.c.l.b16 %v213
      %v273 = vunpack.c.l.b16 %v214
      %v274 = vunpack.c.l.b16 %v215
      %v275 = vunpack.c.l.b16 %v216
      %v276 = vunpack.c.l.b16 %v217
      %v277 = vunpack.c.l.b16 %v218
      %v278 = vunpack.c.l.b16 %v219
      %v279 = vpack.c.b16 %v261, %v260
      %v280 = vpack.c.b16 %v263, %v262
      %v281 = vpack.c.b16 %v265, %v264
      %v282 = vpack.c.b16 %v267, %v266
      %v283 = vpack.c.b16 %v269, %v268
      %v284 = vpack.c.b16 %v271, %v270
      %v285 = vpack.c.b16 %v273, %v272
      %v286 = vpack.c.b16 %v275, %v274
      %v287 = vpack.c.b16 %v277, %v276
      %v288 = vpack.c.b16 %v278, %v278
      %vm298 = vcmask 179200
      %v300 = vsel %vm298, %v239, 0
      %vm302 = vcmask 1042432
      %v304 = vsel %vm302, %v288, 0
      %306 = vmatprep.subr.bf16.mxu0 0
      %307 = vmatpush1.bf16.msra.mxu0 %v279
      %308 = vmatprep.subr.bf16.mxu0 0
      %309 = vmatpush1.bf16.msra.mxu0 %v280
      %310 = vmatprep.subr.bf16.mxu0 0
      %311 = vmatpush1.bf16.msra.mxu0 %v281
      %312 = vmatprep.subr.bf16.mxu0 0
      %313 = vmatpush1.bf16.msra.mxu0 %v282
      %314 = vmatprep.subr.bf16.mxu0 0
      %315 = vmatpush1.bf16.msra.mxu0 %v283
      %316 = vmatprep.subr.bf16.mxu0 0
      %317 = vmatpush1.bf16.msra.mxu0 %v284
      %318 = vmatprep.subr.bf16.mxu0 0
      %319 = vmatpush1.bf16.msra.mxu0 %v285
      %320 = vmatprep.subr.bf16.mxu0 0
      %321 = vmatpush1.bf16.msra.mxu0 %v286
      %322 = vmatprep.subr.bf16.mxu0 0
      %323 = vmatpush1.bf16.msra.mxu0 %v287
      %324 = vmatprep.subr.bf16.mxu0 0
      %325 = vmatpush1.bf16.msra.mxu0 %v304
      %326 = vmatprep.subr.bf16.mxu0 0
      %327 = vmatpush1.bf16.msra.mxu0 0
      %328 = vmatprep.subr.bf16.mxu0 0
      %329 = vmatpush1.bf16.msra.mxu0 0
      %330 = vmatprep.subr.bf16.mxu0 0
      %331 = vmatpush1.bf16.msra.mxu0 0
      %332 = vmatprep.subr.bf16.mxu0 0
      %333 = vmatpush1.bf16.msra.mxu0 0
      %334 = vmatprep.subr.bf16.mxu0 0
      %335 = vmatpush1.bf16.msra.mxu0 0
      %336 = vmatprep.subr.bf16.mxu0 0
      %337 = vmatpush1.bf16.msra.mxu0 0
      %338 = vmatprep.mubr.bf16.mxu0 %v300
      %339 = vmatmul.mubr.bf16.gmra.mrb[0].mxu0 %v238
      %v340 = vpop.f32.mrb[0].mxu0
      %v341 = vadd.f32 %v225, %v340
      %v342 = vpop.f32.mrb[0].mxu0
      %v343 = vpop.f32.mrb[0].mxu0
      %v344 = vadd.f32 %v230, %v343
      %v345 = vpop.f32.mrb[0].mxu0
      %346 = vdwg.mxu0
      %v347 = vsub.f32 0.0, %v341
      %v348 = vsub.f32 0.0, %v344
      %v349 = vmul.f32 %v347, 1.442695
      %v350 = vpow.pop %v349
      %v351 = vmul.f32 %v348, 1.442695
      %v352 = vpow.pop %v351
      %v353 = vadd.f32 %v350, 1.0
      %v354 = vadd.f32 %v352, 1.0
      %v355 = vrcp.pop %v353
      %v356 = vrcp.pop %v354
      %v357 = vld [vmem:[%s3] sm:$0xff]
      %v358 = vld [vmem:[%s3 + $0x8] sm:$0xff]
      %v359 = vld [vmem:[%s3 + $0x10] sm:$0xff]
      %v360 = vld [vmem:[%s3 + $0x18] sm:$0xff]
      %v361 = vld [vmem:[%s3 + $0x20] sm:$0xff]
      %v362 = vld [vmem:[%s3 + $0x28] sm:$0xff]
      %v363 = vld [vmem:[%s3 + $0x30] sm:$0xff]
      %v364 = vld [vmem:[%s3 + $0x38] sm:$0xff]
      %v365 = vld [vmem:[%s3 + $0x40] sm:$0xff]
      %v366 = vld [vmem:[%s3 + $0x48] sm:$0xff]
      %v367 = vld [vmem:[%s3 + $0x50] sm:$0xff]
      %v368 = vld [vmem:[%s3 + $0x58] sm:$0xff]
      %v369 = vld [vmem:[%s3 + $0x60] sm:$0xf]
      %vm370 = vcmask 818176
      %v372 = vsel %vm370, %v355, 0
      %v375 = vsel %vm370, %v356, 0
      %vm377 = vcmask 1043456
      %v379 = vsel %vm377, %v369, 0
      %381 = vmatprep.subr.mxu0 0.0
      %382 = vmatpush1.msra.mxu0 %v357
      %383 = vmatprep.subr.mxu0 0.0
      %384 = vmatpush1.msra.mxu0 %v358
      %385 = vmatprep.subr.mxu0 0.0
      %386 = vmatpush1.msra.mxu0 %v359
      %387 = vmatprep.subr.mxu0 0.0
      %388 = vmatpush1.msra.mxu0 %v360
      %389 = vmatprep.subr.mxu0 0.0
      %390 = vmatpush1.msra.mxu0 %v361
      %391 = vmatprep.subr.mxu0 0.0
      %392 = vmatpush1.msra.mxu0 %v362
      %393 = vmatprep.subr.mxu0 0.0
      %394 = vmatpush1.msra.mxu0 %v363
      %395 = vmatprep.subr.mxu0 0.0
      %396 = vmatpush1.msra.mxu0 %v364
      %397 = vmatprep.subr.mxu0 0.0
      %398 = vmatpush1.msra.mxu0 %v365
      %399 = vmatprep.subr.mxu0 0.0
      %400 = vmatpush1.msra.mxu0 %v366
      %401 = vmatprep.subr.mxu0 0.0
      %402 = vmatpush1.msra.mxu0 %v367
      %403 = vmatprep.subr.mxu0 0.0
      %404 = vmatpush1.msra.mxu0 %v368
      %405 = vmatprep.subr.mxu0 0.0
      %406 = vmatpush1.msra.mxu0 %v379
      %407 = vmatprep.subr.mxu0 0.0
      %408 = vmatpush1.msra.mxu0 0.0
      %409 = vmatprep.subr.mxu0 0.0
      %410 = vmatpush1.msra.mxu0 0.0
      %411 = vmatprep.subr.mxu0 0.0
      %412 = vmatpush1.msra.mxu0 0.0
      %413 = vmatprep.subr.mxu0 0.0
      %414 = vmatpush1.msra.mxu0 0.0
      %415 = vmatprep.subr.mxu0 0.0
      %416 = vmatpush1.msra.mxu0 0.0
      %417 = vmatprep.subr.mxu0 0.0
      %418 = vmatpush1.msra.mxu0 0.0
      %419 = vmatprep.subr.mxu0 0.0
      %420 = vmatpush1.msra.mxu0 0.0
      %421 = vmatprep.subr.mxu0 0.0
      %422 = vmatpush1.msra.mxu0 0.0
      %423 = vmatprep.subr.mxu0 0.0
      %424 = vmatpush1.msra.mxu0 0.0
      %425 = vmatprep.subr.mxu0 0.0
      %426 = vmatpush1.msra.mxu0 0.0
      %427 = vmatprep.subr.mxu0 0.0
      %428 = vmatpush1.msra.mxu0 0.0
      %429 = vmatprep.subr.mxu0 0.0
      %430 = vmatpush1.msra.mxu0 0.0
      %431 = vmatprep.subr.mxu0 0.0
      %432 = vmatpush1.msra.mxu0 0.0
      %433 = vmatprep.subr.mxu0 0.0
      %434 = vmatpush1.msra.mxu0 0.0
      %435 = vmatprep.subr.mxu0 0.0
      %436 = vmatpush1.msra.mxu0 0.0
      %437 = vmatprep.subr.mxu0 0.0
      %438 = vmatpush1.msra.mxu0 0.0
      %439 = vmatprep.subr.mxu0 0.0
      %440 = vmatpush1.msra.mxu0 0.0
      %441 = vmatprep.subr.mxu0 0.0
      %442 = vmatpush1.msra.mxu0 0.0
      %443 = vmatprep.subr.mxu0 0.0
      %444 = vmatpush1.msra.mxu0 0.0
      %445 = vmatprep.mubr.f32.mxu0 0.0
      %446 = vmatmul.mubr.f32.gmra.mrb[0].mxu0 %v372
      %v447 = vpop.f32.mrb[0].mxu0
      %v448 = vadd.f32 0.0, %v447
      %v449 = vpop.f32.mrb[0].mxu0
      %450 = vmatprep.mubr.f32.mxu0 0.0
      %451 = vmatmul.mubr.f32.gmra.mrb[0].mxu0 %v375
      %v452 = vpop.f32.mrb[0].mxu0
      %v453 = vadd.f32 0.0, %v452
      %v454 = vpop.f32.mrb[0].mxu0
      %455 = vdwg.mxu0
      %vm456 = vcmask 203776
      %457 = vst.msk [vmem:[%s197] sm:$0xff] %vm456, %v448
      %458 = vst.msk [vmem:[%s197 + $0x8] sm:$0xff] %vm456, %v453
      %p459 = scmp.lt.s32.totalorder %s15, 1
      %s460 = scalar_select %p459, %s15, 1
      %s461 = smul.addr %s460, 2
      %s462 = smul.addr %s461, 8
      %s463 = scalar_lea.vmem %s4, %s462
      // Predicated region
      $region37: #{lenet_forward.4} parent=35 // pred_check
        %p464 = pneg %p122
      $region38: #{lenet_forward.4} parent=35 // pred_check_branch
        %466 = sbr.rel (%p464) target = $region40
      $region39: #{lenet_forward.4} parent=35 // pred_region
        _
      $region40: #{lenet_forward.4} parent=35 // pred_fallthru
        _
    $region36: #{lenet_forward.4} parent=5 // pred_fallthru
      _
    %p467 = scmp.le.s32.totalorder 2, %s10
    // Predicated region
    $region41: #{lenet_forward.4} parent=5 // pred_check
      %p468 = pneg %p467
    $region42: #{lenet_forward.4} parent=5 // pred_check_branch
      %470 = sbr.rel (%p468) target = $region44
    $region43: #{lenet_forward.4} parent=5 // pred_region
      %s471 = ssub.s32 %s10, 2
      // Predicated region
      $region45: #{lenet_forward.4} parent=43 // pred_check
        %p472 = pneg %p128
      $region46: #{lenet_forward.4} parent=43 // pred_check_branch
        %474 = sbr.rel (%p472) target = $region48
      $region47: #{lenet_forward.4} parent=43 // pred_region
        %p475 = scmp.lt.s32.totalorder %s16, 1
        %s476 = scalar_select %p475, %s16, 1
        %s477 = smul.addr %s476, 2
        %s478 = smul.addr %s477, 8
        %s479 = scalar_lea.vmem %s4, %s478
      $region48: #{lenet_forward.4} parent=43 // pred_fallthru
        _
    $region44: #{lenet_forward.4} parent=5 // pred_fallthru
      _
  $region6: #{lenet_forward.4} parent=0 // loop_footer
    %s14 = sadd.s32 1, %s10
  $region7: #{lenet_forward.4} parent=0 // loop_footer_branch
    %9 = sbr.rel target = $region3
  $region8: #{lenet_forward.4} parent=0 // loop_exit
    _

// kernel: lenet_forward.5
$region0: #{lenet_forward.5}
  #allocation0 [shape = 'u32[]', space=smem, size = 0x4, offset = 0x4, fixed_abs, tag = 'smem constant byte address 0x4 - core index']
  #allocation1 [shape = 'u32[144,128]{1,0:T(1,128)}', space=vmem, size = 0x12000, scoped, tag = 'internal scratch']
  %s0 = inlined_call_operand.vmem [shape: bf16[2,400], index: 0, kind: input, shape index: {}]
  %s1 = inlined_call_operand.vmem [shape: bf16[400,120], index: 1, kind: input, shape index: {}]
  %s2 = inlined_call_operand.vmem [shape: f32[1,120], index: 2, kind: input, shape index: {}]
  %s3 = inlined_call_operand.vmem [shape: bf16[120,84], index: 3, kind: input, shape index: {}]
  %s4 = inlined_call_operand.vmem [shape: f32[1,84], index: 4, kind: input, shape index: {}]
  %s5 = inlined_call_operand.vmem [shape: bf16[84,10], index: 5, kind: input, shape index: {}]
  %s6 = inlined_call_operand.vmem [shape: f32[1,10], index: 6, kind: input, shape index: {}]
  %s7 = inlined_call_operand.hbm [shape: f32[2,10], index: 7, kind: output, shape index: {}]
  %s8 = sld [smem:[#allocation0]]
  $region38: #{lenet_forward.5} parent=0
    _
  %s10 = ssub.s32 1, %s8
  %s11 = scalar_select 0, %s10, %s8
  $region1: #{lenet_forward.5} parent=0
    #allocation2 [shape = 'u8[1024]{0}', space=vmem, size = 0x400, scoped, tag = 'output window, operand 0, single buffered']
    #allocation3 [shape = 's32[1]{0}', space=sflag, size = 0x4, scoped, tag = 'scoped memory for lenet_forward.5']
    %12 = vsyncpa [#allocation3], 0
    // Predicated region
    $region2: #{lenet_forward.5} parent=1 // pred_check
      _
    $region3: #{lenet_forward.5} parent=1 // pred_check_branch
      %14 = sbr.rel (0) target = $region5
    $region4: #{lenet_forward.5} parent=1 // pred_region
      _
    $region5: #{lenet_forward.5} parent=1 // pred_fallthru
      _
    // Predicated region
    $region6: #{lenet_forward.5} parent=1 // pred_check
      _
    $region7: #{lenet_forward.5} parent=1 // pred_check_branch
      %16 = sbr.rel (0) target = $region9
    $region8: #{lenet_forward.5} parent=1 // pred_region
      _
    $region9: #{lenet_forward.5} parent=1 // pred_fallthru
      _
    // Predicated region
    $region10: #{lenet_forward.5} parent=1 // pred_check
      _
    $region11: #{lenet_forward.5} parent=1 // pred_check_branch
      %18 = sbr.rel (0) target = $region13
    $region12: #{lenet_forward.5} parent=1 // pred_region
      _
    $region13: #{lenet_forward.5} parent=1 // pred_fallthru
      _
    // Predicated region
    $region14: #{lenet_forward.5} parent=1 // pred_check
      _
    $region15: #{lenet_forward.5} parent=1 // pred_check_branch
      %20 = sbr.rel (0) target = $region17
    $region16: #{lenet_forward.5} parent=1 // pred_region
      _
    $region17: #{lenet_forward.5} parent=1 // pred_fallthru
      _
    // Predicated region
    $region18: #{lenet_forward.5} parent=1 // pred_check
      _
    $region19: #{lenet_forward.5} parent=1 // pred_check_branch
      %22 = sbr.rel (0) target = $region21
    $region20: #{lenet_forward.5} parent=1 // pred_region
      _
    $region21: #{lenet_forward.5} parent=1 // pred_fallthru
      _
    // Predicated region
    $region22: #{lenet_forward.5} parent=1 // pred_check
      _
    $region23: #{lenet_forward.5} parent=1 // pred_check_branch
      %24 = sbr.rel (0) target = $region25
    $region24: #{lenet_forward.5} parent=1 // pred_region
      _
    $region25: #{lenet_forward.5} parent=1 // pred_fallthru
      _
    // Predicated region
    $region26: #{lenet_forward.5} parent=1 // pred_check
      _
    $region27: #{lenet_forward.5} parent=1 // pred_check_branch
      %26 = sbr.rel (0) target = $region29
    $region28: #{lenet_forward.5} parent=1 // pred_region
      _
    $region29: #{lenet_forward.5} parent=1 // pred_fallthru
      _
    %v28 = vld [vmem:[%s0] sm:$0xf]
    %v29 = vld [vmem:[%s1] sm:$0xf]
    %v30 = vld [vmem:[%s1 + $0x4] sm:$0xf]
    %v31 = vld [vmem:[%s1 + $0x8] sm:$0xf]
    %v32 = vld [vmem:[%s1 + $0xc] sm:$0xf]
    %v33 = vld [vmem:[%s1 + $0x10] sm:$0xf]
    %v34 = vld [vmem:[%s1 + $0x14] sm:$0xf]
    %v35 = vld [vmem:[%s1 + $0x18] sm:$0xf]
    %v36 = vld [vmem:[%s1 + $0x1c] sm:$0xf]
    %v37 = vld [vmem:[%s1 + $0x20] sm:$0xf]
    %v38 = vld [vmem:[%s1 + $0x24] sm:$0xf]
    %v39 = vld [vmem:[%s1 + $0x28] sm:$0xf]
    %v40 = vld [vmem:[%s1 + $0x2c] sm:$0xf]
    %v41 = vld [vmem:[%s1 + $0x30] sm:$0xf]
    %v42 = vld [vmem:[%s1 + $0x34] sm:$0xf]
    %v43 = vld [vmem:[%s1 + $0x38] sm:$0xf]
    %v44 = vld [vmem:[%s1 + $0x3c] sm:$0xf]
    %v45 = vld [vmem:[%s1 + $0x40] sm:$0xf]
    %v46 = vld [vmem:[%s1 + $0x44] sm:$0xf]
    %v47 = vld [vmem:[%s1 + $0x48] sm:$0xf]
    %v48 = vld [vmem:[%s1 + $0x4c] sm:$0xf]
    %v49 = vld [vmem:[%s1 + $0x50] sm:$0xf]
    %v50 = vld [vmem:[%s1 + $0x54] sm:$0xf]
    %v51 = vld [vmem:[%s1 + $0x58] sm:$0xf]
    %v52 = vld [vmem:[%s1 + $0x5c] sm:$0xf]
    %v53 = vld [vmem:[%s1 + $0x60] sm:$0xf]
    %v54 = vld [vmem:[%s1 + $0x64] sm:$0xf]
    %v55 = vld [vmem:[%s1 + $0x68] sm:$0xf]
    %v56 = vld [vmem:[%s1 + $0x6c] sm:$0xf]
    %v57 = vld [vmem:[%s1 + $0x70] sm:$0xf]
    %v58 = vld [vmem:[%s1 + $0x74] sm:$0xf]
    %v59 = vld [vmem:[%s1 + $0x78] sm:$0xf]
    %v60 = vld [vmem:[%s1 + $0x7c] sm:$0xf]
    %v61 = vld [vmem:[%s1 + $0x80] sm:$0xf]
    %v62 = vld [vmem:[%s1 + $0x84] sm:$0xf]
    %v63 = vld [vmem:[%s1 + $0x88] sm:$0xf]
    %v64 = vld [vmem:[%s1 + $0x8c] sm:$0xf]
    %v65 = vld [vmem:[%s1 + $0x90] sm:$0xf]
    %v66 = vld [vmem:[%s1 + $0x94] sm:$0xf]
    %v67 = vld [vmem:[%s1 + $0x98] sm:$0xf]
    %v68 = vld [vmem:[%s1 + $0x9c] sm:$0xf]
    %v69 = vld [vmem:[%s1 + $0xa0] sm:$0xf]
    %v70 = vld [vmem:[%s1 + $0xa4] sm:$0xf]
    %v71 = vld [vmem:[%s1 + $0xa8] sm:$0xf]
    %v72 = vld [vmem:[%s1 + $0xac] sm:$0xf]
    %v73 = vld [vmem:[%s1 + $0xb0] sm:$0xf]
    %v74 = vld [vmem:[%s1 + $0xb4] sm:$0xf]
    %v75 = vld [vmem:[%s1 + $0xb8] sm:$0xf]
    %v76 = vld [vmem:[%s1 + $0xbc] sm:$0xf]
    %v77 = vld [vmem:[%s1 + $0xc0] sm:$0xf]
    %v78 = vld [vmem:[%s1 + $0xc4] sm:$0xf]
    %v79 = vld [vmem:[%s2] sm:$0x1]
    %v81 = vlaneseq
    %v82 = vshrl.u32 %v81, 7
    %v83 = vsub.s32 0, %v82
    %v84 = vrot.slane %v79, %v83
    %v88 = vunpack.c.l.s4 1966171168
    %v89 = vunpack.c.0.s8 %v88
    %v90 = vlaneseq
    %v91 = vshrl.u32 %v90, 7
    %v92 = vsub.s32 %v89, %v91
    %v93 = vrot.slane %v28, %v92
    %v94 = vcombine.high %v93, %v93
    %v96 = vunpack.c.l.s4 1966171168
    %v97 = vunpack.c.0.s8 %v96
    %v98 = vlaneseq
    %v99 = vshrl.u32 %v98, 7
    %v100 = vsub.s32 %v97, %v99
    %v101 = vrot.slane %v93, %v100
    %v103 = vunpack.c.l.s4 1966171168
    %v104 = vunpack.c.0.s8 %v103
    %v105 = vlaneseq
    %v106 = vshrl.u32 %v105, 7
    %v107 = vsub.s32 %v104, %v106
    %v108 = vrot.slane %v94, %v107
    %v109 = vcombine.high %v101, %v101
    %v110 = vcombine.high %v108, %v108
    %v164 = vunpack.c.l.b16 %v29
    %v165 = vunpack.c.l.b16 %v30
    %v166 = vunpack.c.l.b16 %v31
    %v167 = vunpack.c.l.b16 %v32
    %v168 = vunpack.c.l.b16 %v33
    %v169 = vunpack.c.l.b16 %v34
    %v170 = vunpack.c.l.b16 %v35
    %v171 = vunpack.c.l.b16 %v36
    %v172 = vunpack.c.l.b16 %v37
    %v173 = vunpack.c.l.b16 %v38
    %v174 = vunpack.c.l.b16 %v39
    %v175 = vunpack.c.l.b16 %v40
    %v176 = vunpack.c.l.b16 %v41
    %v177 = vunpack.c.l.b16 %v42
    %v178 = vunpack.c.l.b16 %v43
    %v179 = vunpack.c.l.b16 %v44
    %v180 = vunpack.c.l.b16 %v45
    %v181 = vunpack.c.l.b16 %v46
    %v182 = vunpack.c.l.b16 %v47
    %v183 = vunpack.c.l.b16 %v48
    %v184 = vunpack.c.l.b16 %v49
    %v185 = vunpack.c.l.b16 %v50
    %v186 = vunpack.c.l.b16 %v51
    %v187 = vunpack.c.l.b16 %v52
    %v188 = vunpack.c.l.b16 %v53
    %v189 = vunpack.c.l.b16 %v54
    %v190 = vunpack.c.l.b16 %v55
    %v191 = vunpack.c.l.b16 %v56
    %v192 = vunpack.c.l.b16 %v57
    %v193 = vunpack.c.l.b16 %v58
    %v194 = vunpack.c.l.b16 %v59
    %v195 = vunpack.c.l.b16 %v60
    %v196 = vunpack.c.l.b16 %v61
    %v197 = vunpack.c.l.b16 %v62
    %v198 = vunpack.c.l.b16 %v63
    %v199 = vunpack.c.l.b16 %v64
    %v200 = vunpack.c.l.b16 %v65
    %v201 = vunpack.c.l.b16 %v66
    %v202 = vunpack.c.l.b16 %v67
    %v203 = vunpack.c.l.b16 %v68
    %v204 = vunpack.c.l.b16 %v69
    %v205 = vunpack.c.l.b16 %v70
    %v206 = vunpack.c.l.b16 %v71
    %v207 = vunpack.c.l.b16 %v72
    %v208 = vunpack.c.l.b16 %v73
    %v209 = vunpack.c.l.b16 %v74
    %v210 = vunpack.c.l.b16 %v75
    %v211 = vunpack.c.l.b16 %v76
    %v212 = vunpack.c.l.b16 %v77
    %v213 = vunpack.c.l.b16 %v78
    %v214 = vpack.c.b16 %v165, %v164
    %v215 = vpack.c.b16 %v167, %v166
    %v216 = vpack.c.b16 %v169, %v168
    %v217 = vpack.c.b16 %v171, %v170
    %v218 = vpack.c.b16 %v173, %v172
    %v219 = vpack.c.b16 %v175, %v174
    %v220 = vpack.c.b16 %v177, %v176
    %v221 = vpack.c.b16 %v179, %v178
    %v222 = vpack.c.b16 %v181, %v180
    %v223 = vpack.c.b16 %v183, %v182
    %v224 = vpack.c.b16 %v185, %v184
    %v225 = vpack.c.b16 %v187, %v186
    %v226 = vpack.c.b16 %v189, %v188
    %v227 = vpack.c.b16 %v191, %v190
    %v228 = vpack.c.b16 %v193, %v192
    %v229 = vpack.c.b16 %v195, %v194
    %v230 = vpack.c.b16 %v197, %v196
    %v231 = vpack.c.b16 %v199, %v198
    %v232 = vpack.c.b16 %v201, %v200
    %v233 = vpack.c.b16 %v203, %v202
    %v234 = vpack.c.b16 %v205, %v204
    %v235 = vpack.c.b16 %v207, %v206
    %v236 = vpack.c.b16 %v209, %v208
    %v237 = vpack.c.b16 %v211, %v210
    %v238 = vpack.c.b16 %v213, %v212
    %vm264 = vcmask 130048
    %v266 = vsel %vm264, %v110, 0
    %268 = vmatprep.subr.bf16.mxu0 0
    %269 = vmatpush1.bf16.msra.mxu0 %v214
    %270 = vmatprep.subr.bf16.mxu0 0
    %271 = vmatpush1.bf16.msra.mxu0 %v215
    %272 = vmatprep.subr.bf16.mxu0 0
    %273 = vmatpush1.bf16.msra.mxu0 %v216
    %274 = vmatprep.subr.bf16.mxu0 0
    %275 = vmatpush1.bf16.msra.mxu0 %v217
    %276 = vmatprep.subr.bf16.mxu0 0
    %277 = vmatpush1.bf16.msra.mxu0 %v218
    %278 = vmatprep.subr.bf16.mxu0 0
    %279 = vmatpush1.bf16.msra.mxu0 %v219
    %280 = vmatprep.subr.bf16.mxu0 0
    %281 = vmatpush1.bf16.msra.mxu0 %v220
    %282 = vmatprep.subr.bf16.mxu0 0
    %283 = vmatpush1.bf16.msra.mxu0 %v221
    %284 = vmatprep.subr.bf16.mxu0 0
    %285 = vmatpush1.bf16.msra.mxu0 %v222
    %286 = vmatprep.subr.bf16.mxu0 0
    %287 = vmatpush1.bf16.msra.mxu0 %v223
    %288 = vmatprep.subr.bf16.mxu0 0
    %289 = vmatpush1.bf16.msra.mxu0 %v224
    %290 = vmatprep.subr.bf16.mxu0 0
    %291 = vmatpush1.bf16.msra.mxu0 %v225
    %292 = vmatprep.subr.bf16.mxu0 0
    %293 = vmatpush1.bf16.msra.mxu0 %v226
    %294 = vmatprep.subr.bf16.mxu0 0
    %295 = vmatpush1.bf16.msra.mxu0 %v227
    %296 = vmatprep.subr.bf16.mxu0 0
    %297 = vmatpush1.bf16.msra.mxu0 %v228
    %298 = vmatprep.subr.bf16.mxu0 0
    %299 = vmatpush1.bf16.msra.mxu0 %v229
    %300 = vmatprep.mubr.bf16.mxu0 %v108
    %301 = vmatmul.mubr.bf16.gmra.mrb[0].mxu0 %v101
    %v302 = vpop.f32.mrb[0].mxu0
    %v303 = vadd.f32 %v84, %v302
    %v304 = vpop.f32.mrb[0].mxu0
    %v305 = vpop.f32.mrb[0].mxu0
    %v306 = vpop.f32.mrb[0].mxu0
    %307 = vdwg.mxu0
    %308 = vmatprep.subr.bf16.mxu0 0
    %309 = vmatpush1.bf16.msra.mxu0 %v230
    %310 = vmatprep.subr.bf16.mxu0 0
    %311 = vmatpush1.bf16.msra.mxu0 %v231
    %312 = vmatprep.subr.bf16.mxu0 0
    %313 = vmatpush1.bf16.msra.mxu0 %v232
    %314 = vmatprep.subr.bf16.mxu0 0
    %315 = vmatpush1.bf16.msra.mxu0 %v233
    %316 = vmatprep.subr.bf16.mxu0 0
    %317 = vmatpush1.bf16.msra.mxu0 %v234
    %318 = vmatprep.subr.bf16.mxu0 0
    %319 = vmatpush1.bf16.msra.mxu0 %v235
    %320 = vmatprep.subr.bf16.mxu0 0
    %321 = vmatpush1.bf16.msra.mxu0 %v236
    %322 = vmatprep.subr.bf16.mxu0 0
    %323 = vmatpush1.bf16.msra.mxu0 %v237
    %324 = vmatprep.subr.bf16.mxu0 0
    %325 = vmatpush1.bf16.msra.mxu0 %v238
    %326 = vmatprep.subr.bf16.mxu0 0
    %327 = vmatpush1.bf16.msra.mxu0 0
    %328 = vmatprep.subr.bf16.mxu0 0
    %329 = vmatpush1.bf16.msra.mxu0 0
    %330 = vmatprep.subr.bf16.mxu0 0
    %331 = vmatpush1.bf16.msra.mxu0 0
    %332 = vmatprep.subr.bf16.mxu0 0
    %333 = vmatpush1.bf16.msra.mxu0 0
    %334 = vmatprep.subr.bf16.mxu0 0
    %335 = vmatpush1.bf16.msra.mxu0 0
    %336 = vmatprep.subr.bf16.mxu0 0
    %337 = vmatpush1.bf16.msra.mxu0 0
    %338 = vmatprep.subr.bf16.mxu0 0
    %339 = vmatpush1.bf16.msra.mxu0 0
    %340 = vmatprep.mubr.bf16.mxu0 %v266
    %341 = vmatmul.mubr.bf16.gmra.mrb[0].mxu0 %v109
    %v342 = vpop.f32.mrb[0].mxu0
    %v343 = vadd.f32 %v303, %v342
    %v344 = vpop.f32.mrb[0].mxu0
    %v345 = vpop.f32.mrb[0].mxu0
    %v346 = vpop.f32.mrb[0].mxu0
    %347 = vdwg.mxu0
    %v348 = vsub.f32 0.0, %v343
    %v349 = vmul.f32 %v348, 1.442695
    %v350 = vpow.pop %v349
    %v351 = vadd.f32 %v350, 1.0
    %v352 = vrcp.pop %v351
    %v353 = vpack.c.bf16 %v352, %v352
    %v354 = vld [vmem:[%s3] sm:$0xf]
    %v355 = vld [vmem:[%s3 + $0x4] sm:$0xf]
    %v356 = vld [vmem:[%s3 + $0x8] sm:$0xf]
    %v357 = vld [vmem:[%s3 + $0xc] sm:$0xf]
    %v358 = vld [vmem:[%s3 + $0x10] sm:$0xf]
    %v359 = vld [vmem:[%s3 + $0x14] sm:$0xf]
    %v360 = vld [vmem:[%s3 + $0x18] sm:$0xf]
    %v361 = vld [vmem:[%s3 + $0x1c] sm:$0xf]
    %v362 = vld [vmem:[%s3 + $0x20] sm:$0xf]
    %v363 = vld [vmem:[%s3 + $0x24] sm:$0xf]
    %v364 = vld [vmem:[%s3 + $0x28] sm:$0xf]
    %v365 = vld [vmem:[%s3 + $0x2c] sm:$0xf]
    %v366 = vld [vmem:[%s3 + $0x30] sm:$0xf]
    %v367 = vld [vmem:[%s3 + $0x34] sm:$0xf]
    %v368 = vld [vmem:[%s3 + $0x38] sm:$0xf]
    %v369 = vld [vmem:[%s4] sm:$0x1]
    %v371 = vlaneseq
    %v372 = vshrl.u32 %v371, 7
    %v373 = vsub.s32 0, %v372
    %v374 = vrot.slane %v369, %v373
    %v391 = vunpack.c.l.b16 %v354
    %v392 = vunpack.c.l.b16 %v355
    %v393 = vunpack.c.l.b16 %v356
    %v394 = vunpack.c.l.b16 %v357
    %v395 = vunpack.c.l.b16 %v358
    %v396 = vunpack.c.l.b16 %v359
    %v397 = vunpack.c.l.b16 %v360
    %v398 = vunpack.c.l.b16 %v361
    %v399 = vunpack.c.l.b16 %v362
    %v400 = vunpack.c.l.b16 %v363
    %v401 = vunpack.c.l.b16 %v364
    %v402 = vunpack.c.l.b16 %v365
    %v403 = vunpack.c.l.b16 %v366
    %v404 = vunpack.c.l.b16 %v367
    %v405 = vunpack.c.l.b16 %v368
    %v406 = vpack.c.b16 %v392, %v391
    %v407 = vpack.c.b16 %v394, %v393
    %v408 = vpack.c.b16 %v396, %v395
    %v409 = vpack.c.b16 %v398, %v397
    %v410 = vpack.c.b16 %v400, %v399
    %v411 = vpack.c.b16 %v402, %v401
    %v412 = vpack.c.b16 %v404, %v403
    %v413 = vpack.c.b16 %v405, %v405
    %vm421 = vcmask 982016
    %v423 = vsel %vm421, %v353, 0
    %vm425 = vcmask 1043456
    %v427 = vsel %vm425, %v413, 0
    %429 = vmatprep.subr.bf16.mxu0 0
    %430 = vmatpush1.bf16.msra.mxu0 %v406
    %431 = vmatprep.subr.bf16.mxu0 0
    %432 = vmatpush1.bf16.msra.mxu0 %v407
    %433 = vmatprep.subr.bf16.mxu0 0
    %434 = vmatpush1.bf16.msra.mxu0 %v408
    %435 = vmatprep.subr.bf16.mxu0 0
    %436 = vmatpush1.bf16.msra.mxu0 %v409
    %437 = vmatprep.subr.bf16.mxu0 0
    %438 = vmatpush1.bf16.msra.mxu0 %v410
    %439 = vmatprep.subr.bf16.mxu0 0
    %440 = vmatpush1.bf16.msra.mxu0 %v411
    %441 = vmatprep.subr.bf16.mxu0 0
    %442 = vmatpush1.bf16.msra.mxu0 %v412
    %443 = vmatprep.subr.bf16.mxu0 0
    %444 = vmatpush1.bf16.msra.mxu0 %v427
    %445 = vmatprep.subr.bf16.mxu0 0
    %446 = vmatpush1.bf16.msra.mxu0 0
    %447 = vmatprep.subr.bf16.mxu0 0
    %448 = vmatpush1.bf16.msra.mxu0 0
    %449 = vmatprep.subr.bf16.mxu0 0
    %450 = vmatpush1.bf16.msra.mxu0 0
    %451 = vmatprep.subr.bf16.mxu0 0
    %452 = vmatpush1.bf16.msra.mxu0 0
    %453 = vmatprep.subr.bf16.mxu0 0
    %454 = vmatpush1.bf16.msra.mxu0 0
    %455 = vmatprep.subr.bf16.mxu0 0
    %456 = vmatpush1.bf16.msra.mxu0 0
    %457 = vmatprep.subr.bf16.mxu0 0
    %458 = vmatpush1.bf16.msra.mxu0 0
    %459 = vmatprep.subr.bf16.mxu0 0
    %460 = vmatpush1.bf16.msra.mxu0 0
    %461 = vmatprep.mubr.bf16.mxu0 0
    %462 = vmatmul.mubr.bf16.gmra.mrb[0].mxu0 %v423
    %v463 = vpop.f32.mrb[0].mxu0
    %v464 = vadd.f32 %v374, %v463
    %v465 = vpop.f32.mrb[0].mxu0
    %v466 = vpop.f32.mrb[0].mxu0
    %v467 = vpop.f32.mrb[0].mxu0
    %468 = vdwg.mxu0
    %v469 = vsub.f32 0.0, %v464
    %v470 = vmul.f32 %v469, 1.442695
    %v471 = vpow.pop %v470
    %v472 = vadd.f32 %v471, 1.0
    %v473 = vrcp.pop %v472
    %v474 = vpack.c.bf16 %v473, %v473
    %v475 = vld [vmem:[%s5] sm:$0xf]
    %v476 = vld [vmem:[%s5 + $0x4] sm:$0xf]
    %v477 = vld [vmem:[%s5 + $0x8] sm:$0xf]
    %v478 = vld [vmem:[%s5 + $0xc] sm:$0xf]
    %v479 = vld [vmem:[%s5 + $0x10] sm:$0xf]
    %v480 = vld [vmem:[%s5 + $0x14] sm:$0xf]
    %v481 = vld [vmem:[%s5 + $0x18] sm:$0xf]
    %v482 = vld [vmem:[%s5 + $0x1c] sm:$0xf]
    %v483 = vld [vmem:[%s5 + $0x20] sm:$0xf]
    %v484 = vld [vmem:[%s5 + $0x24] sm:$0xf]
    %v485 = vld [vmem:[%s5 + $0x28] sm:$0x3]
    %v486 = vld [vmem:[%s6] sm:$0x1]
    %v488 = vlaneseq
    %v489 = vshrl.u32 %v488, 7
    %v490 = vsub.s32 0, %v489
    %v491 = vrot.slane %v486, %v490
    %v504 = vunpack.c.l.b16 %v475
    %v505 = vunpack.c.l.b16 %v476
    %v506 = vunpack.c.l.b16 %v477
    %v507 = vunpack.c.l.b16 %v478
    %v508 = vunpack.c.l.b16 %v479
    %v509 = vunpack.c.l.b16 %v480
    %v510 = vunpack.c.l.b16 %v481
    %v511 = vunpack.c.l.b16 %v482
    %v512 = vunpack.c.l.b16 %v483
    %v513 = vunpack.c.l.b16 %v484
    %v514 = vunpack.c.l.b16 %v485
    %v515 = vpack.c.b16 %v505, %v504
    %v516 = vpack.c.b16 %v507, %v506
    %v517 = vpack.c.b16 %v509, %v508
    %v518 = vpack.c.b16 %v511, %v510
    %v519 = vpack.c.b16 %v513, %v512
    %v520 = vpack.c.b16 %v514, %v514
    %vm526 = vcmask 687104
    %v528 = vsel %vm526, %v474, 0
    %vm530 = vcmask 1041408
    %v532 = vsel %vm530, %v520, 0
    %534 = vmatprep.subr.bf16.mxu0 0
    %535 = vmatpush1.bf16.msra.mxu0 %v515
    %536 = vmatprep.subr.bf16.mxu0 0
    %537 = vmatpush1.bf16.msra.mxu0 %v516
    %538 = vmatprep.subr.bf16.mxu0 0
    %539 = vmatpush1.bf16.msra.mxu0 %v517
    %540 = vmatprep.subr.bf16.mxu0 0
    %541 = vmatpush1.bf16.msra.mxu0 %v518
    %542 = vmatprep.subr.bf16.mxu0 0
    %543 = vmatpush1.bf16.msra.mxu0 %v519
    %544 = vmatprep.subr.bf16.mxu0 0
    %545 = vmatpush1.bf16.msra.mxu0 %v532
    %546 = vmatprep.subr.bf16.mxu0 0
    %547 = vmatpush1.bf16.msra.mxu0 0
    %548 = vmatprep.subr.bf16.mxu0 0
    %549 = vmatpush1.bf16.msra.mxu0 0
    %550 = vmatprep.subr.bf16.mxu0 0
    %551 = vmatpush1.bf16.msra.mxu0 0
    %552 = vmatprep.subr.bf16.mxu0 0
    %553 = vmatpush1.bf16.msra.mxu0 0
    %554 = vmatprep.subr.bf16.mxu0 0
    %555 = vmatpush1.bf16.msra.mxu0 0
    %556 = vmatprep.subr.bf16.mxu0 0
    %557 = vmatpush1.bf16.msra.mxu0 0
    %558 = vmatprep.subr.bf16.mxu0 0
    %559 = vmatpush1.bf16.msra.mxu0 0
    %560 = vmatprep.subr.bf16.mxu0 0
    %561 = vmatpush1.bf16.msra.mxu0 0
    %562 = vmatprep.subr.bf16.mxu0 0
    %563 = vmatpush1.bf16.msra.mxu0 0
    %564 = vmatprep.subr.bf16.mxu0 0
    %565 = vmatpush1.bf16.msra.mxu0 0
    %566 = vmatprep.mubr.bf16.mxu0 0
    %567 = vmatmul.mubr.bf16.gmra.mrb[0].mxu0 %v528
    %v568 = vpop.f32.mrb[0].mxu0
    %v569 = vadd.f32 %v491, %v568
    %v570 = vpop.f32.mrb[0].mxu0
    %v571 = vpop.f32.mrb[0].mxu0
    %v572 = vpop.f32.mrb[0].mxu0
    %573 = vdwg.mxu0
    %vm574 = vcmask 74752
    %575 = vst.msk [vmem:[#allocation2] sm:$0x3] %vm574, %v569
    // Predicated region
    $region30: #{lenet_forward.5} parent=1 // pred_check
      _
    $region31: #{lenet_forward.5} parent=1 // pred_check_branch
      %577 = sbr.rel (0) target = $region33
    $region32: #{lenet_forward.5} parent=1 // pred_region
      %s579 = ssub.s32 32, 32
      %580 = vsyncadd [#allocation3], %s579
      %s582 = sshll.u32 [#allocation2], 4
      %s583 = int_to_ptr.vmem [resolvable:$true] %s582
      %585 = dma.vmem_to_hbm [thread:$0]  %s583, 32, %s7, [#allocation3]
    $region33: #{lenet_forward.5} parent=1 // pred_fallthru
      _
    // Predicated region
    $region34: #{lenet_forward.5} parent=1 // pred_check
      _
    $region35: #{lenet_forward.5} parent=1 // pred_check_branch
      %587 = sbr.rel (0) target = $region37
    $region36: #{lenet_forward.5} parent=1 // pred_region
      %588 = dma.done [#allocation3], 32
    $region37: #{lenet_forward.5} parent=1 // pred_fallthru
      _
    %589 = vsyncpa [#allocation3], 1

</llo_original>
